<compile_context>
chip_gen: v6e
topology: v6e:2x2x1
jax: 0.10.0
libtpu: 0.0.40
codegen_flags: <defaults>
</compile_context>

<pallas_src>
import functools

import jax
import jax.numpy as jnp
from jax.experimental import pallas as pl
from jax.experimental.pallas import tpu as pltpu


# ----------------------------------------------------------------------------
# Pallas kernel: one (batch_chunk, time_chunk) tile of the decode.
# ----------------------------------------------------------------------------
def decoder_kernel(
    emb_ref,    # (Tc*B, H)   embedded inputs for this chunk (time-major within chunk)
    init_ref,   # (L, 1, H)   learned initial hidden state
    wih_ref,    # (L, H, 3H)  fused input-to-hidden weights, gate order (r, z, n)
    whh_ref,    # (L, H, 3H)  fused hidden-to-hidden weights
    brz_ref,    # (L, 1, 2H)  folded r/z biases (b_ih + b_hh)
    bni_ref,    # (L, 1, H)   n-gate input bias
    bnh_ref,    # (L, 1, H)   n-gate hidden bias
    wlin_ref,   # (H, O)      output linear weight (transposed)
    blin_ref,   # (1, O)      output linear bias
    out_ref,    # (Tc*B, O)   output chunk
    state_ref,  # (L, B, H)   VMEM scratch: hidden state carried across time chunks
    buf_a,      # (Tc*B, H)   VMEM scratch: inter-layer activations (ping)
    buf_b,      # (Tc*B, H)   VMEM scratch: inter-layer activations (pong)
    *,
    num_layers: int,
    t_chunk: int,
    batch: int,
    hidden: int,
):
    L, Tc, B, H = num_layers, t_chunk, batch, hidden
    H2 = 2 * H

    # First time chunk of every batch chunk: (re)initialize the carried state.
    @pl.when(pl.program_id(1) == 0)
    def _init():
        for l in range(L):
            state_ref[l] = jnp.broadcast_to(init_ref[l], (B, H))

    bufs = (buf_a, buf_b)
    x_all = emb_ref[...]                                    # (Tc*B, H) layer-0 input

    for l in range(L):
        # --- batched phase (off the serial critical path) --------------------
        # One MXU matmul projects the whole chunk's input to all three gates,
        # with the r/z and n input biases pre-folded into the result.
        gi = jnp.dot(x_all, wih_ref[l], preferred_element_type=jnp.float32)   # (Tc*B, 3H)
        gi_rz = gi[:, :H2] + brz_ref[l]                                        # (Tc*B, 2H)
        gi_n = gi[:, H2:] + bni_ref[l]                                         # (Tc*B, H)
        whh = whh_ref[l]                                                       # (H, 3H)
        bnh = bnh_ref[l]                                                       # (1, H)
        dst = bufs[l % 2]

        # --- sequential phase: only gh-matmul + gate elementwise per step ----
        # TODO(synk): for Tc > ~16 switch the static unroll to
        # lax.fori_loop(..., unroll=2..4) + pl.ds(pl.multiple_of(t*B, 8), B);
        # at the chunk sizes used here a full unroll is cheapest.
        h = state_ref[l]
        for t in range(Tc):
            gh = jnp.dot(h, whh, preferred_element_type=jnp.float32)          # (B, 3H)
            rz = jax.nn.sigmoid(gi_rz[t * B:(t + 1) * B] + gh[:, :H2])        # (B, 2H)
            r = rz[:, :H]
            z = rz[:, H:]
            n = jnp.tanh(gi_n[t * B:(t + 1) * B] + r * (gh[:, H2:] + bnh))
            h = (1.0 - z) * n + z * h
            dst[pl.ds(t * B, B), :] = h
        state_ref[l] = h                  # carry hidden state to the next time chunk

        x_all = dst[...]                  # inter-layer dropout: identity (eval mode)

    # Hoisted, batched output linear: one (Tc*B, H) @ (H, O) matmul + bulk store.
    # TODO(synk): if O grows large, zero-pad it to a multiple of 128 in the wrapper
    # for lane-dense stores.
    out_ref[...] = (
        jnp.dot(x_all, wlin_ref[...], preferred_element_type=jnp.float32)
        + blin_ref[...]
    )


# ----------------------------------------------------------------------------
# Wrapper: embedding lookup + parameter fusion in plain JAX, RNN hot loop in Pallas.
# ----------------------------------------------------------------------------
def autoregressive_decoder_forward(y, params, *, start_symbol, time_chunk=4,
                                   batch_chunks=None):
    """y: (B, U_max) int32 token ids.  Returns out: (B, U_max + 1, O) float32."""
    B, U_max = y.shape
    T = U_max + 1

    embedding = params["embedding"]          # (num_tokens + 1, H)
    init = params["initial_state"]           # (L, 1, H)
    wih = params["wih"]                      # (L, 3, H, H)  (per-gate, pre-transposed)
    whh = params["whh"]                      # (L, 3, H, H)
    bih = params["bih"]                      # (L, 3, 1, H)
    bhh = params["bhh"]                      # (L, 3, 1, H)
    wlin = params["wlin"]                    # (H, O)
    blin = params["blin"]                    # (1, O)

    L, _, H = init.shape
    O = wlin.shape[1]

    # --- parameter fusion / bias folding (plain JAX, once) ---
    wih3 = jnp.concatenate([wih[:, 0], wih[:, 1], wih[:, 2]], axis=-1)   # (L, H, 3H)
    whh3 = jnp.concatenate([whh[:, 0], whh[:, 1], whh[:, 2]], axis=-1)   # (L, H, 3H)
    brz = jnp.concatenate([bih[:, 0] + bhh[:, 0], bih[:, 1] + bhh[:, 1]], axis=-1)
    bn_ih = bih[:, 2]                                                     # (L, 1, H)
    bn_hh = bhh[:, 2]                                                     # (L, 1, H)

    # --- decoder inputs: start symbol at u == 0, then y[:, u - 1] ---
    start = jnp.full((B, 1), start_symbol, dtype=y.dtype)
    tokens = jnp.concatenate([start, y], axis=1)                          # (B, T)

    # --- batch chunking (2nd TensorCore on v7x) + sublane padding ---
    if batch_chunks is None:
        batch_chunks = 2 if B > 8 else 1
    B_half = ((B + 8 * batch_chunks - 1) // (8 * batch_chunks)) * 8
    B_pad = B_half * batch_chunks

    # --- time chunking: balanced chunks, minimal padding ---
    n_tc = (T + time_chunk - 1) // time_chunk
    T_chunk = (T + n_tc - 1) // n_tc
    T_pad = n_tc * T_chunk

    tokens = jnp.pad(tokens, ((0, B_pad - B), (0, T_pad - T)),
                     constant_values=start_symbol)                        # (B_pad, T_pad)

    # Gather embeddings directly in (batch_chunk, time, batch) order — no
    # transpose round trip of the embedded activations through HBM.
    # TODO(synk): for large vocab/H, move this gather into the kernel via
    # PrefetchScalarGridSpec + a pl.Element row-gather BlockSpec.
    tok = tokens.reshape(batch_chunks, B_half, T_pad).transpose(0, 2, 1)   # (bc, T_pad, B_half)
    emb = embedding[tok].astype(jnp.float32)                               # (bc, T_pad, B_half, H)
    emb = emb.reshape(batch_chunks * T_pad * B_half, H)

    kernel = functools.partial(
        decoder_kernel, num_layers=L, t_chunk=T_chunk, batch=B_half, hidden=H
    )

    rows = T_chunk * B_half
    vmem = pl.BlockSpec(memory_space=pltpu.MemorySpace.VMEM)
    emb_spec = pl.BlockSpec((rows, H), lambda bc, tc: (bc * n_tc + tc, 0))
    out_spec = pl.BlockSpec((rows, O), lambda bc, tc: (bc * n_tc + tc, 0))

    # Explicit scoped-VMEM budget (double-buffered blocks + weights + scratch).
    fp32 = 4
    footprint = fp32 * (
        2 * rows * H + 2 * rows * O                      # pipelined emb / out blocks
        + 2 * L * H * 3 * H + L * 4 * H                  # fused weights + gate biases
        + H * O + O + L * H                              # output linear + init state
        + L * B_half * H + 2 * rows * H                  # carried state + ping/pong scratch
    )
    vmem_limit = int(min(max(4 * footprint, 16 * 2 ** 20), 64 * 2 ** 20))

    out_flat = pl.pallas_call(
        kernel,
        out_shape=jax.ShapeDtypeStruct((batch_chunks * T_pad * B_half, O), jnp.float32),
        grid=(batch_chunks, n_tc),
        in_specs=[emb_spec] + [vmem] * 8,
        out_specs=out_spec,
        scratch_shapes=[
            pltpu.VMEM((L, B_half, H), jnp.float32),     # carried per-layer hidden state
            pltpu.VMEM((rows, H), jnp.float32),          # inter-layer activations (ping)
            pltpu.VMEM((rows, H), jnp.float32),          # inter-layer activations (pong)
        ],
        compiler_params=pltpu.CompilerParams(
            dimension_semantics=("parallel", "arbitrary"),
            vmem_limit_bytes=vmem_limit,
        ),
    )(emb, init, wih3, whh3, brz, bn_ih, bn_hh, wlin, blin)

    out = out_flat.reshape(batch_chunks, T_pad, B_half, O)[:, :T]          # (bc, T, B_half, O)
    out = jnp.transpose(out, (0, 2, 1, 3)).reshape(B_pad, T, O)[:B]        # (B, T, O)
    return out


# ----------------------------------------------------------------------------
# Pure-JAX reference (mirrors the PyTorch forward exactly) for verification.
# ----------------------------------------------------------------------------
def reference_forward(y, params, *, start_symbol):
    embedding = params["embedding"]
    init = params["initial_state"][:, 0, :]   # (L, H)
    wih, whh = params["wih"], params["whh"]
    bih = params["bih"][:, :, 0, :]           # (L, 3, H)
    bhh = params["bhh"][:, :, 0, :]
    wlin, blin = params["wlin"], params["blin"][0]

    B, U_max = y.shape
    L, H = init.shape
    state = jnp.broadcast_to(init[None], (B, L, H))

    start = jnp.full((B, 1), start_symbol, dtype=y.dtype)
    tokens = jnp.concatenate([start, y], axis=1)  # (B, T)

    outs = []
    for u in range(U_max + 1):
        x = embedding[tokens[:, u]]
        new_state = []
        for l in range(L):
            h = state[:, l]
            gi_r = x @ wih[l, 0] + bih[l, 0]
            gi_z = x @ wih[l, 1] + bih[l, 1]
            gi_n = x @ wih[l, 2] + bih[l, 2]
            gh_r = h @ whh[l, 0] + bhh[l, 0]
            gh_z = h @ whh[l, 1] + bhh[l, 1]
            gh_n = h @ whh[l, 2] + bhh[l, 2]
            r = jax.nn.sigmoid(gi_r + gh_r)
            z = jax.nn.sigmoid(gi_z + gh_z)
            n = jnp.tanh(gi_n + r * gh_n)
            h_new = (1.0 - z) * n + z * h
            new_state.append(h_new)
            x = h_new
        state = jnp.stack(new_state, axis=1)
        outs.append(x @ wlin + blin)
    return jnp.stack(outs, axis=1)


# ----------------------------------------------------------------------------
# Deterministic parameter initialization + smoke test.
# ----------------------------------------------------------------------------
def init_params(key, *, num_tokens, num_layers, hidden, num_outputs):
    ks = jax.random.split(key, 8)
    scale = 1.0 / jnp.sqrt(jnp.float32(hidden))
    return {
        "embedding": jax.random.normal(ks[0], (num_tokens + 1, hidden), jnp.float32),
        "initial_state": jax.random.normal(ks[1], (num_layers, 1, hidden), jnp.float32),
        "wih": jax.random.uniform(ks[2], (num_layers, 3, hidden, hidden), jnp.float32,
                                  -scale, scale),
        "whh": jax.random.uniform(ks[3], (num_layers, 3, hidden, hidden), jnp.float32,
                                  -scale, scale),
        "bih": jax.random.uniform(ks[4], (num_layers, 3, 1, hidden), jnp.float32,
                                  -scale, scale),
        "bhh": jax.random.uniform(ks[5], (num_layers, 3, 1, hidden), jnp.float32,
                                  -scale, scale),
        "wlin": jax.random.uniform(ks[6], (hidden, num_outputs), jnp.float32,
                                   -scale, scale),
        "blin": jax.random.uniform(ks[7], (1, num_outputs), jnp.float32,
                                   -scale, scale),
    }


if __name__ == "__main__":
    # Config consistent with the module:
    #   num_decoder_hidden=32, num_decoder_layers=2, num_tokens=10, num_joiner_hidden=16
    NUM_TOKENS = 10
    NUM_LAYERS = 2
    HIDDEN = 32
    NUM_OUTPUTS = 16
    START_SYMBOL = NUM_TOKENS

    key = jax.random.PRNGKey(0)
    k_params, k_y1, k_y2 = jax.random.split(key, 3)
    params = init_params(
        k_params,
        num_tokens=NUM_TOKENS,
        num_layers=NUM_LAYERS,
        hidden=HIDDEN,
        num_outputs=NUM_OUTPUTS,
    )

    # Case 1: module's toy config (batch=2, U_max=8) -> single batch chunk.
    y1 = jax.random.randint(k_y1, (2, 8), 0, NUM_TOKENS, dtype=jnp.int32)
    out1 = jax.block_until_ready(
        autoregressive_decoder_forward(y1, params, start_symbol=START_SYMBOL))
    ref1 = jax.block_until_ready(reference_forward(y1, params, start_symbol=START_SYMBOL))
    assert out1.shape == (2, 9, NUM_OUTPUTS), out1.shape
    assert out1.dtype == jnp.float32
    assert jnp.allclose(out1, ref1, atol=1e-5, rtol=1e-5), float(jnp.max(jnp.abs(out1 - ref1)))

    # Case 2: larger batch -> two batch chunks ("parallel" grid axis; 2nd TC on v7x)
    # plus a time length that exercises chunk padding.
    y2 = jax.random.randint(k_y2, (16, 10), 0, NUM_TOKENS, dtype=jnp.int32)
    out2 = jax.block_until_ready(
        autoregressive_decoder_forward(y2, params, start_symbol=START_SYMBOL))
    ref2 = jax.block_until_ready(reference_forward(y2, params, start_symbol=START_SYMBOL))
    assert out2.shape == (16, 11, NUM_OUTPUTS), out2.shape
    assert jnp.allclose(out2, ref2, atol=1e-5, rtol=1e-5), float(jnp.max(jnp.abs(out2 - ref2)))

    print("KERNEL_OK")
</pallas_src>

<mosaic_0001>
module attributes {stable_mosaic.version = 11 : i64} {
  func.func @decoder_kernel(%arg0: i32, %arg1: i32, %arg2: memref<24x32xf32, #tpu.memory_space<vmem>>, %arg3: memref<2x1x32xf32, #tpu.memory_space<vmem>>, %arg4: memref<2x32x96xf32, #tpu.memory_space<vmem>>, %arg5: memref<2x32x96xf32, #tpu.memory_space<vmem>>, %arg6: memref<2x1x64xf32, #tpu.memory_space<vmem>>, %arg7: memref<2x1x32xf32, #tpu.memory_space<vmem>>, %arg8: memref<2x1x32xf32, #tpu.memory_space<vmem>>, %arg9: memref<32x16xf32, #tpu.memory_space<vmem>>, %arg10: memref<1x16xf32, #tpu.memory_space<vmem>>, %arg11: memref<24x16xf32, #tpu.memory_space<vmem>>, %arg12: memref<2x8x32xf32, #tpu.memory_space<vmem>>, %arg13: memref<24x32xf32, #tpu.memory_space<vmem>>, %arg14: memref<24x32xf32, #tpu.memory_space<vmem>>) attributes {dimension_semantics = [#tpu.dimension_semantics<parallel>, #tpu.dimension_semantics<arbitrary>], iteration_bounds = array<i64: 1, 3>, scalar_prefetch = 0 : i64, scratch_operands = 3 : i64, tpu.core_type = #tpu.core_type<tc>, window_params = [{transform_indices = @transform_0, window_bounds = array<i64: 24, 32>}, {pipeline_mode = #tpu.pipeline_mode<synchronous>, transform_indices = @transform_1, window_bounds = array<i64: 2, 1, 32>}, {pipeline_mode = #tpu.pipeline_mode<synchronous>, transform_indices = @transform_2, window_bounds = array<i64: 2, 32, 96>}, {pipeline_mode = #tpu.pipeline_mode<synchronous>, transform_indices = @transform_3, window_bounds = array<i64: 2, 32, 96>}, {pipeline_mode = #tpu.pipeline_mode<synchronous>, transform_indices = @transform_4, window_bounds = array<i64: 2, 1, 64>}, {pipeline_mode = #tpu.pipeline_mode<synchronous>, transform_indices = @transform_5, window_bounds = array<i64: 2, 1, 32>}, {pipeline_mode = #tpu.pipeline_mode<synchronous>, transform_indices = @transform_6, window_bounds = array<i64: 2, 1, 32>}, {pipeline_mode = #tpu.pipeline_mode<synchronous>, transform_indices = @transform_7, window_bounds = array<i64: 32, 16>}, {pipeline_mode = #tpu.pipeline_mode<synchronous>, transform_indices = @transform_8, window_bounds = array<i64: 1, 16>}, {transform_indices = @transform_9, window_bounds = array<i64: 24, 16>}]} {
    %c0_i32 = arith.constant 0 : i32
    %0 = arith.cmpi eq, %arg1, %c0_i32 : i32
    %1 = arith.extui %0 : i1 to i32
    %c0_i32_0 = arith.constant 0 : i32
    %2 = arith.cmpi ne, %1, %c0_i32_0 : i32
    scf.if %2 {
      %c0_83 = arith.constant 0 : index
      %c0_84 = arith.constant 0 : index
      %c0_85 = arith.constant 0 : index
      %200 = vector.load %arg3[%c0_83, %c0_84, %c0_85] : memref<2x1x32xf32, #tpu.memory_space<vmem>>, vector<1x1x32xf32>
      %201 = vector.shape_cast %200 : vector<1x1x32xf32> to vector<1x32xf32>
      %202 = vector.shape_cast %201 : vector<1x32xf32> to vector<1x32xf32>
      %203 = vector.broadcast %202 : vector<1x32xf32> to vector<8x32xf32>
      %c0_86 = arith.constant 0 : index
      %c0_87 = arith.constant 0 : index
      %c0_88 = arith.constant 0 : index
      %204 = vector.load %arg12[%c0_86, %c0_87, %c0_88] : memref<2x8x32xf32, #tpu.memory_space<vmem>>, vector<1x8x32xf32>
      %205 = vector.shape_cast %204 : vector<1x8x32xf32> to vector<8x32xf32>
      %206 = vector.shape_cast %203 : vector<8x32xf32> to vector<1x8x32xf32>
      tpu.vector_store %arg12[%c0_86, %c0_87, %c0_88], %206 {strides = array<i32>} : memref<2x8x32xf32, #tpu.memory_space<vmem>>, vector<1x8x32xf32>,
      %c1_89 = arith.constant 1 : index
      %c0_90 = arith.constant 0 : index
      %c0_91 = arith.constant 0 : index
      %207 = vector.load %arg3[%c1_89, %c0_90, %c0_91] : memref<2x1x32xf32, #tpu.memory_space<vmem>>, vector<1x1x32xf32>
      %208 = vector.shape_cast %207 : vector<1x1x32xf32> to vector<1x32xf32>
      %209 = vector.shape_cast %208 : vector<1x32xf32> to vector<1x32xf32>
      %210 = vector.broadcast %209 : vector<1x32xf32> to vector<8x32xf32>
      %c1_92 = arith.constant 1 : index
      %c0_93 = arith.constant 0 : index
      %c0_94 = arith.constant 0 : index
      %211 = vector.load %arg12[%c1_92, %c0_93, %c0_94] : memref<2x8x32xf32, #tpu.memory_space<vmem>>, vector<1x8x32xf32>
      %212 = vector.shape_cast %211 : vector<1x8x32xf32> to vector<8x32xf32>
      %213 = vector.shape_cast %210 : vector<8x32xf32> to vector<1x8x32xf32>
      tpu.vector_store %arg12[%c1_92, %c0_93, %c0_94], %213 {strides = array<i32>} : memref<2x8x32xf32, #tpu.memory_space<vmem>>, vector<1x8x32xf32>,
    } else {
    }
    %c0 = arith.constant 0 : index
    %c0_1 = arith.constant 0 : index
    %3 = vector.load %arg2[%c0, %c0_1] : memref<24x32xf32, #tpu.memory_space<vmem>>, vector<24x32xf32>
    %c0_2 = arith.constant 0 : index
    %c0_3 = arith.constant 0 : index
    %c0_4 = arith.constant 0 : index
    %4 = vector.load %arg4[%c0_2, %c0_3, %c0_4] : memref<2x32x96xf32, #tpu.memory_space<vmem>>, vector<1x32x96xf32>
    %5 = vector.shape_cast %4 : vector<1x32x96xf32> to vector<32x96xf32>
    %cst = arith.constant dense<0.000000e+00> : vector<24x96xf32>
    %6 = tpu.matmul %3, %5, %cst {dimension_numbers = #tpu.dot_dimension_numbers<[1], [0], [0], [1], [0, 0, 1, 1], [], []>} : vector<24x32xf32>, vector<32x96xf32>, vector<24x96xf32> -> vector<24x96xf32>
    %7 = vector.extract_strided_slice %6 {offsets = [0, 0], sizes = [24, 64], strides = [1, 1]} : vector<24x96xf32> to vector<24x64xf32>
    %c0_5 = arith.constant 0 : index
    %c0_6 = arith.constant 0 : index
    %c0_7 = arith.constant 0 : index
    %8 = vector.load %arg6[%c0_5, %c0_6, %c0_7] : memref<2x1x64xf32, #tpu.memory_space<vmem>>, vector<1x1x64xf32>
    %9 = vector.shape_cast %8 : vector<1x1x64xf32> to vector<1x64xf32>
    %10 = vector.broadcast %9 : vector<1x64xf32> to vector<24x64xf32>
    %11 = arith.addf %7, %10 : vector<24x64xf32>
    %12 = vector.extract_strided_slice %6 {offsets = [0, 64], sizes = [24, 32], strides = [1, 1]} : vector<24x96xf32> to vector<24x32xf32>
    %c0_8 = arith.constant 0 : index
    %c0_9 = arith.constant 0 : index
    %c0_10 = arith.constant 0 : index
    %13 = vector.load %arg7[%c0_8, %c0_9, %c0_10] : memref<2x1x32xf32, #tpu.memory_space<vmem>>, vector<1x1x32xf32>
    %14 = vector.shape_cast %13 : vector<1x1x32xf32> to vector<1x32xf32>
    %15 = vector.broadcast %14 : vector<1x32xf32> to vector<24x32xf32>
    %16 = arith.addf %12, %15 : vector<24x32xf32>
    %c0_11 = arith.constant 0 : index
    %c0_12 = arith.constant 0 : index
    %c0_13 = arith.constant 0 : index
    %17 = vector.load %arg5[%c0_11, %c0_12, %c0_13] : memref<2x32x96xf32, #tpu.memory_space<vmem>>, vector<1x32x96xf32>
    %18 = vector.shape_cast %17 : vector<1x32x96xf32> to vector<32x96xf32>
    %c0_14 = arith.constant 0 : index
    %c0_15 = arith.constant 0 : index
    %c0_16 = arith.constant 0 : index
    %19 = vector.load %arg8[%c0_14, %c0_15, %c0_16] : memref<2x1x32xf32, #tpu.memory_space<vmem>>, vector<1x1x32xf32>
    %20 = vector.shape_cast %19 : vector<1x1x32xf32> to vector<1x32xf32>
    %c0_17 = arith.constant 0 : index
    %c0_18 = arith.constant 0 : index
    %c0_19 = arith.constant 0 : index
    %21 = vector.load %arg12[%c0_17, %c0_18, %c0_19] : memref<2x8x32xf32, #tpu.memory_space<vmem>>, vector<1x8x32xf32>
    %22 = vector.shape_cast %21 : vector<1x8x32xf32> to vector<8x32xf32>
    %cst_20 = arith.constant dense<0.000000e+00> : vector<8x96xf32>
    %23 = tpu.matmul %22, %18, %cst_20 {dimension_numbers = #tpu.dot_dimension_numbers<[1], [0], [0], [1], [0, 0, 1, 1], [], []>} : vector<8x32xf32>, vector<32x96xf32>, vector<8x96xf32> -> vector<8x96xf32>
    %24 = vector.extract_strided_slice %11 {offsets = [0, 0], sizes = [8, 64], strides = [1, 1]} : vector<24x64xf32> to vector<8x64xf32>
    %25 = vector.extract_strided_slice %23 {offsets = [0, 0], sizes = [8, 64], strides = [1, 1]} : vector<8x96xf32> to vector<8x64xf32>
    %26 = arith.addf %24, %25 : vector<8x64xf32>
    %27 = arith.negf %26 : vector<8x64xf32>
    %28 = math.exp %27 : vector<8x64xf32>
    %cst_21 = arith.constant 1.000000e+00 : f32
    %29 = vector.broadcast %cst_21 : f32 to vector<8x64xf32>
    %30 = arith.addf %29, %28 : vector<8x64xf32>
    %31 = arith.divf %29, %30 : vector<8x64xf32>
    %32 = vector.extract_strided_slice %31 {offsets = [0, 0], sizes = [8, 32], strides = [1, 1]} : vector<8x64xf32> to vector<8x32xf32>
    %33 = vector.extract_strided_slice %31 {offsets = [0, 32], sizes = [8, 32], strides = [1, 1]} : vector<8x64xf32> to vector<8x32xf32>
    %34 = vector.extract_strided_slice %16 {offsets = [0, 0], sizes = [8, 32], strides = [1, 1]} : vector<24x32xf32> to vector<8x32xf32>
    %35 = vector.extract_strided_slice %23 {offsets = [0, 64], sizes = [8, 32], strides = [1, 1]} : vector<8x96xf32> to vector<8x32xf32>
    %36 = vector.broadcast %20 : vector<1x32xf32> to vector<8x32xf32>
    %37 = arith.addf %35, %36 : vector<8x32xf32>
    %38 = arith.mulf %32, %37 : vector<8x32xf32>
    %39 = arith.addf %34, %38 : vector<8x32xf32>
    %40 = math.tanh %39 : vector<8x32xf32>
    %cst_22 = arith.constant 1.000000e+00 : f32
    %41 = vector.broadcast %cst_22 : f32 to vector<8x32xf32>
    %42 = arith.subf %41, %33 : vector<8x32xf32>
    %43 = arith.mulf %42, %40 : vector<8x32xf32>
    %44 = arith.mulf %33, %22 : vector<8x32xf32>
    %45 = arith.addf %43, %44 : vector<8x32xf32>
    %c0_23 = arith.constant 0 : index
    %c0_24 = arith.constant 0 : index
    %46 = vector.load %arg13[%c0_23, %c0_24] : memref<24x32xf32, #tpu.memory_space<vmem>>, vector<8x32xf32>
    tpu.vector_store %arg13[%c0_23, %c0_24], %45 {strides = array<i32>} : memref<24x32xf32, #tpu.memory_space<vmem>>, vector<8x32xf32>,
    %cst_25 = arith.constant dense<0.000000e+00> : vector<8x96xf32>
    %47 = tpu.matmul %45, %18, %cst_25 {dimension_numbers = #tpu.dot_dimension_numbers<[1], [0], [0], [1], [0, 0, 1, 1], [], []>} : vector<8x32xf32>, vector<32x96xf32>, vector<8x96xf32> -> vector<8x96xf32>
    %48 = vector.extract_strided_slice %11 {offsets = [8, 0], sizes = [8, 64], strides = [1, 1]} : vector<24x64xf32> to vector<8x64xf32>
    %49 = vector.extract_strided_slice %47 {offsets = [0, 0], sizes = [8, 64], strides = [1, 1]} : vector<8x96xf32> to vector<8x64xf32>
    %50 = arith.addf %48, %49 : vector<8x64xf32>
    %51 = arith.negf %50 : vector<8x64xf32>
    %52 = math.exp %51 : vector<8x64xf32>
    %cst_26 = arith.constant 1.000000e+00 : f32
    %53 = vector.broadcast %cst_26 : f32 to vector<8x64xf32>
    %54 = arith.addf %53, %52 : vector<8x64xf32>
    %55 = arith.divf %53, %54 : vector<8x64xf32>
    %56 = vector.extract_strided_slice %55 {offsets = [0, 0], sizes = [8, 32], strides = [1, 1]} : vector<8x64xf32> to vector<8x32xf32>
    %57 = vector.extract_strided_slice %55 {offsets = [0, 32], sizes = [8, 32], strides = [1, 1]} : vector<8x64xf32> to vector<8x32xf32>
    %58 = vector.extract_strided_slice %16 {offsets = [8, 0], sizes = [8, 32], strides = [1, 1]} : vector<24x32xf32> to vector<8x32xf32>
    %59 = vector.extract_strided_slice %47 {offsets = [0, 64], sizes = [8, 32], strides = [1, 1]} : vector<8x96xf32> to vector<8x32xf32>
    %60 = vector.broadcast %20 : vector<1x32xf32> to vector<8x32xf32>
    %61 = arith.addf %59, %60 : vector<8x32xf32>
    %62 = arith.mulf %56, %61 : vector<8x32xf32>
    %63 = arith.addf %58, %62 : vector<8x32xf32>
    %64 = math.tanh %63 : vector<8x32xf32>
    %cst_27 = arith.constant 1.000000e+00 : f32
    %65 = vector.broadcast %cst_27 : f32 to vector<8x32xf32>
    %66 = arith.subf %65, %57 : vector<8x32xf32>
    %67 = arith.mulf %66, %64 : vector<8x32xf32>
    %68 = arith.mulf %57, %45 : vector<8x32xf32>
    %69 = arith.addf %67, %68 : vector<8x32xf32>
    %c8 = arith.constant 8 : index
    %c0_28 = arith.constant 0 : index
    %70 = vector.load %arg13[%c8, %c0_28] : memref<24x32xf32, #tpu.memory_space<vmem>>, vector<8x32xf32>
    tpu.vector_store %arg13[%c8, %c0_28], %69 {strides = array<i32>} : memref<24x32xf32, #tpu.memory_space<vmem>>, vector<8x32xf32>,
    %cst_29 = arith.constant dense<0.000000e+00> : vector<8x96xf32>
    %71 = tpu.matmul %69, %18, %cst_29 {dimension_numbers = #tpu.dot_dimension_numbers<[1], [0], [0], [1], [0, 0, 1, 1], [], []>} : vector<8x32xf32>, vector<32x96xf32>, vector<8x96xf32> -> vector<8x96xf32>
    %72 = vector.extract_strided_slice %11 {offsets = [16, 0], sizes = [8, 64], strides = [1, 1]} : vector<24x64xf32> to vector<8x64xf32>
    %73 = vector.extract_strided_slice %71 {offsets = [0, 0], sizes = [8, 64], strides = [1, 1]} : vector<8x96xf32> to vector<8x64xf32>
    %74 = arith.addf %72, %73 : vector<8x64xf32>
    %75 = arith.negf %74 : vector<8x64xf32>
    %76 = math.exp %75 : vector<8x64xf32>
    %cst_30 = arith.constant 1.000000e+00 : f32
    %77 = vector.broadcast %cst_30 : f32 to vector<8x64xf32>
    %78 = arith.addf %77, %76 : vector<8x64xf32>
    %79 = arith.divf %77, %78 : vector<8x64xf32>
    %80 = vector.extract_strided_slice %79 {offsets = [0, 0], sizes = [8, 32], strides = [1, 1]} : vector<8x64xf32> to vector<8x32xf32>
    %81 = vector.extract_strided_slice %79 {offsets = [0, 32], sizes = [8, 32], strides = [1, 1]} : vector<8x64xf32> to vector<8x32xf32>
    %82 = vector.extract_strided_slice %16 {offsets = [16, 0], sizes = [8, 32], strides = [1, 1]} : vector<24x32xf32> to vector<8x32xf32>
    %83 = vector.extract_strided_slice %71 {offsets = [0, 64], sizes = [8, 32], strides = [1, 1]} : vector<8x96xf32> to vector<8x32xf32>
    %84 = vector.broadcast %20 : vector<1x32xf32> to vector<8x32xf32>
    %85 = arith.addf %83, %84 : vector<8x32xf32>
    %86 = arith.mulf %80, %85 : vector<8x32xf32>
    %87 = arith.addf %82, %86 : vector<8x32xf32>
    %88 = math.tanh %87 : vector<8x32xf32>
    %cst_31 = arith.constant 1.000000e+00 : f32
    %89 = vector.broadcast %cst_31 : f32 to vector<8x32xf32>
    %90 = arith.subf %89, %81 : vector<8x32xf32>
    %91 = arith.mulf %90, %88 : vector<8x32xf32>
    %92 = arith.mulf %81, %69 : vector<8x32xf32>
    %93 = arith.addf %91, %92 : vector<8x32xf32>
    %c16 = arith.constant 16 : index
    %c0_32 = arith.constant 0 : index
    %94 = vector.load %arg13[%c16, %c0_32] : memref<24x32xf32, #tpu.memory_space<vmem>>, vector<8x32xf32>
    tpu.vector_store %arg13[%c16, %c0_32], %93 {strides = array<i32>} : memref<24x32xf32, #tpu.memory_space<vmem>>, vector<8x32xf32>,
    %c0_33 = arith.constant 0 : index
    %c0_34 = arith.constant 0 : index
    %c0_35 = arith.constant 0 : index
    %95 = vector.load %arg12[%c0_33, %c0_34, %c0_35] : memref<2x8x32xf32, #tpu.memory_space<vmem>>, vector<1x8x32xf32>
    %96 = vector.shape_cast %95 : vector<1x8x32xf32> to vector<8x32xf32>
    %97 = vector.shape_cast %93 : vector<8x32xf32> to vector<1x8x32xf32>
    tpu.vector_store %arg12[%c0_33, %c0_34, %c0_35], %97 {strides = array<i32>} : memref<2x8x32xf32, #tpu.memory_space<vmem>>, vector<1x8x32xf32>,
    %c0_36 = arith.constant 0 : index
    %c0_37 = arith.constant 0 : index
    %98 = vector.load %arg13[%c0_36, %c0_37] : memref<24x32xf32, #tpu.memory_space<vmem>>, vector<24x32xf32>
    %c1 = arith.constant 1 : index
    %c0_38 = arith.constant 0 : index
    %c0_39 = arith.constant 0 : index
    %99 = vector.load %arg4[%c1, %c0_38, %c0_39] : memref<2x32x96xf32, #tpu.memory_space<vmem>>, vector<1x32x96xf32>
    %100 = vector.shape_cast %99 : vector<1x32x96xf32> to vector<32x96xf32>
    %cst_40 = arith.constant dense<0.000000e+00> : vector<24x96xf32>
    %101 = tpu.matmul %98, %100, %cst_40 {dimension_numbers = #tpu.dot_dimension_numbers<[1], [0], [0], [1], [0, 0, 1, 1], [], []>} : vector<24x32xf32>, vector<32x96xf32>, vector<24x96xf32> -> vector<24x96xf32>
    %102 = vector.extract_strided_slice %101 {offsets = [0, 0], sizes = [24, 64], strides = [1, 1]} : vector<24x96xf32> to vector<24x64xf32>
    %c1_41 = arith.constant 1 : index
    %c0_42 = arith.constant 0 : index
    %c0_43 = arith.constant 0 : index
    %103 = vector.load %arg6[%c1_41, %c0_42, %c0_43] : memref<2x1x64xf32, #tpu.memory_space<vmem>>, vector<1x1x64xf32>
    %104 = vector.shape_cast %103 : vector<1x1x64xf32> to vector<1x64xf32>
    %105 = vector.broadcast %104 : vector<1x64xf32> to vector<24x64xf32>
    %106 = arith.addf %102, %105 : vector<24x64xf32>
    %107 = vector.extract_strided_slice %101 {offsets = [0, 64], sizes = [24, 32], strides = [1, 1]} : vector<24x96xf32> to vector<24x32xf32>
    %c1_44 = arith.constant 1 : index
    %c0_45 = arith.constant 0 : index
    %c0_46 = arith.constant 0 : index
    %108 = vector.load %arg7[%c1_44, %c0_45, %c0_46] : memref<2x1x32xf32, #tpu.memory_space<vmem>>, vector<1x1x32xf32>
    %109 = vector.shape_cast %108 : vector<1x1x32xf32> to vector<1x32xf32>
    %110 = vector.broadcast %109 : vector<1x32xf32> to vector<24x32xf32>
    %111 = arith.addf %107, %110 : vector<24x32xf32>
    %c1_47 = arith.constant 1 : index
    %c0_48 = arith.constant 0 : index
    %c0_49 = arith.constant 0 : index
    %112 = vector.load %arg5[%c1_47, %c0_48, %c0_49] : memref<2x32x96xf32, #tpu.memory_space<vmem>>, vector<1x32x96xf32>
    %113 = vector.shape_cast %112 : vector<1x32x96xf32> to vector<32x96xf32>
    %c1_50 = arith.constant 1 : index
    %c0_51 = arith.constant 0 : index
    %c0_52 = arith.constant 0 : index
    %114 = vector.load %arg8[%c1_50, %c0_51, %c0_52] : memref<2x1x32xf32, #tpu.memory_space<vmem>>, vector<1x1x32xf32>
    %115 = vector.shape_cast %114 : vector<1x1x32xf32> to vector<1x32xf32>
    %c1_53 = arith.constant 1 : index
    %c0_54 = arith.constant 0 : index
    %c0_55 = arith.constant 0 : index
    %116 = vector.load %arg12[%c1_53, %c0_54, %c0_55] : memref<2x8x32xf32, #tpu.memory_space<vmem>>, vector<1x8x32xf32>
    %117 = vector.shape_cast %116 : vector<1x8x32xf32> to vector<8x32xf32>
    %cst_56 = arith.constant dense<0.000000e+00> : vector<8x96xf32>
    %118 = tpu.matmul %117, %113, %cst_56 {dimension_numbers = #tpu.dot_dimension_numbers<[1], [0], [0], [1], [0, 0, 1, 1], [], []>} : vector<8x32xf32>, vector<32x96xf32>, vector<8x96xf32> -> vector<8x96xf32>
    %119 = vector.extract_strided_slice %106 {offsets = [0, 0], sizes = [8, 64], strides = [1, 1]} : vector<24x64xf32> to vector<8x64xf32>
    %120 = vector.extract_strided_slice %118 {offsets = [0, 0], sizes = [8, 64], strides = [1, 1]} : vector<8x96xf32> to vector<8x64xf32>
    %121 = arith.addf %119, %120 : vector<8x64xf32>
    %122 = arith.negf %121 : vector<8x64xf32>
    %123 = math.exp %122 : vector<8x64xf32>
    %cst_57 = arith.constant 1.000000e+00 : f32
    %124 = vector.broadcast %cst_57 : f32 to vector<8x64xf32>
    %125 = arith.addf %124, %123 : vector<8x64xf32>
    %126 = arith.divf %124, %125 : vector<8x64xf32>
    %127 = vector.extract_strided_slice %126 {offsets = [0, 0], sizes = [8, 32], strides = [1, 1]} : vector<8x64xf32> to vector<8x32xf32>
    %128 = vector.extract_strided_slice %126 {offsets = [0, 32], sizes = [8, 32], strides = [1, 1]} : vector<8x64xf32> to vector<8x32xf32>
    %129 = vector.extract_strided_slice %111 {offsets = [0, 0], sizes = [8, 32], strides = [1, 1]} : vector<24x32xf32> to vector<8x32xf32>
    %130 = vector.extract_strided_slice %118 {offsets = [0, 64], sizes = [8, 32], strides = [1, 1]} : vector<8x96xf32> to vector<8x32xf32>
    %131 = vector.broadcast %115 : vector<1x32xf32> to vector<8x32xf32>
    %132 = arith.addf %130, %131 : vector<8x32xf32>
    %133 = arith.mulf %127, %132 : vector<8x32xf32>
    %134 = arith.addf %129, %133 : vector<8x32xf32>
    %135 = math.tanh %134 : vector<8x32xf32>
    %cst_58 = arith.constant 1.000000e+00 : f32
    %136 = vector.broadcast %cst_58 : f32 to vector<8x32xf32>
    %137 = arith.subf %136, %128 : vector<8x32xf32>
    %138 = arith.mulf %137, %135 : vector<8x32xf32>
    %139 = arith.mulf %128, %117 : vector<8x32xf32>
    %140 = arith.addf %138, %139 : vector<8x32xf32>
    %c0_59 = arith.constant 0 : index
    %c0_60 = arith.constant 0 : index
    %141 = vector.load %arg14[%c0_59, %c0_60] : memref<24x32xf32, #tpu.memory_space<vmem>>, vector<8x32xf32>
    tpu.vector_store %arg14[%c0_59, %c0_60], %140 {strides = array<i32>} : memref<24x32xf32, #tpu.memory_space<vmem>>, vector<8x32xf32>,
    %cst_61 = arith.constant dense<0.000000e+00> : vector<8x96xf32>
    %142 = tpu.matmul %140, %113, %cst_61 {dimension_numbers = #tpu.dot_dimension_numbers<[1], [0], [0], [1], [0, 0, 1, 1], [], []>} : vector<8x32xf32>, vector<32x96xf32>, vector<8x96xf32> -> vector<8x96xf32>
    %143 = vector.extract_strided_slice %106 {offsets = [8, 0], sizes = [8, 64], strides = [1, 1]} : vector<24x64xf32> to vector<8x64xf32>
    %144 = vector.extract_strided_slice %142 {offsets = [0, 0], sizes = [8, 64], strides = [1, 1]} : vector<8x96xf32> to vector<8x64xf32>
    %145 = arith.addf %143, %144 : vector<8x64xf32>
    %146 = arith.negf %145 : vector<8x64xf32>
    %147 = math.exp %146 : vector<8x64xf32>
    %cst_62 = arith.constant 1.000000e+00 : f32
    %148 = vector.broadcast %cst_62 : f32 to vector<8x64xf32>
    %149 = arith.addf %148, %147 : vector<8x64xf32>
    %150 = arith.divf %148, %149 : vector<8x64xf32>
    %151 = vector.extract_strided_slice %150 {offsets = [0, 0], sizes = [8, 32], strides = [1, 1]} : vector<8x64xf32> to vector<8x32xf32>
    %152 = vector.extract_strided_slice %150 {offsets = [0, 32], sizes = [8, 32], strides = [1, 1]} : vector<8x64xf32> to vector<8x32xf32>
    %153 = vector.extract_strided_slice %111 {offsets = [8, 0], sizes = [8, 32], strides = [1, 1]} : vector<24x32xf32> to vector<8x32xf32>
    %154 = vector.extract_strided_slice %142 {offsets = [0, 64], sizes = [8, 32], strides = [1, 1]} : vector<8x96xf32> to vector<8x32xf32>
    %155 = vector.broadcast %115 : vector<1x32xf32> to vector<8x32xf32>
    %156 = arith.addf %154, %155 : vector<8x32xf32>
    %157 = arith.mulf %151, %156 : vector<8x32xf32>
    %158 = arith.addf %153, %157 : vector<8x32xf32>
    %159 = math.tanh %158 : vector<8x32xf32>
    %cst_63 = arith.constant 1.000000e+00 : f32
    %160 = vector.broadcast %cst_63 : f32 to vector<8x32xf32>
    %161 = arith.subf %160, %152 : vector<8x32xf32>
    %162 = arith.mulf %161, %159 : vector<8x32xf32>
    %163 = arith.mulf %152, %140 : vector<8x32xf32>
    %164 = arith.addf %162, %163 : vector<8x32xf32>
    %c8_64 = arith.constant 8 : index
    %c0_65 = arith.constant 0 : index
    %165 = vector.load %arg14[%c8_64, %c0_65] : memref<24x32xf32, #tpu.memory_space<vmem>>, vector<8x32xf32>
    tpu.vector_store %arg14[%c8_64, %c0_65], %164 {strides = array<i32>} : memref<24x32xf32, #tpu.memory_space<vmem>>, vector<8x32xf32>,
    %cst_66 = arith.constant dense<0.000000e+00> : vector<8x96xf32>
    %166 = tpu.matmul %164, %113, %cst_66 {dimension_numbers = #tpu.dot_dimension_numbers<[1], [0], [0], [1], [0, 0, 1, 1], [], []>} : vector<8x32xf32>, vector<32x96xf32>, vector<8x96xf32> -> vector<8x96xf32>
    %167 = vector.extract_strided_slice %106 {offsets = [16, 0], sizes = [8, 64], strides = [1, 1]} : vector<24x64xf32> to vector<8x64xf32>
    %168 = vector.extract_strided_slice %166 {offsets = [0, 0], sizes = [8, 64], strides = [1, 1]} : vector<8x96xf32> to vector<8x64xf32>
    %169 = arith.addf %167, %168 : vector<8x64xf32>
    %170 = arith.negf %169 : vector<8x64xf32>
    %171 = math.exp %170 : vector<8x64xf32>
    %cst_67 = arith.constant 1.000000e+00 : f32
    %172 = vector.broadcast %cst_67 : f32 to vector<8x64xf32>
    %173 = arith.addf %172, %171 : vector<8x64xf32>
    %174 = arith.divf %172, %173 : vector<8x64xf32>
    %175 = vector.extract_strided_slice %174 {offsets = [0, 0], sizes = [8, 32], strides = [1, 1]} : vector<8x64xf32> to vector<8x32xf32>
    %176 = vector.extract_strided_slice %174 {offsets = [0, 32], sizes = [8, 32], strides = [1, 1]} : vector<8x64xf32> to vector<8x32xf32>
    %177 = vector.extract_strided_slice %111 {offsets = [16, 0], sizes = [8, 32], strides = [1, 1]} : vector<24x32xf32> to vector<8x32xf32>
    %178 = vector.extract_strided_slice %166 {offsets = [0, 64], sizes = [8, 32], strides = [1, 1]} : vector<8x96xf32> to vector<8x32xf32>
    %179 = vector.broadcast %115 : vector<1x32xf32> to vector<8x32xf32>
    %180 = arith.addf %178, %179 : vector<8x32xf32>
    %181 = arith.mulf %175, %180 : vector<8x32xf32>
    %182 = arith.addf %177, %181 : vector<8x32xf32>
    %183 = math.tanh %182 : vector<8x32xf32>
    %cst_68 = arith.constant 1.000000e+00 : f32
    %184 = vector.broadcast %cst_68 : f32 to vector<8x32xf32>
    %185 = arith.subf %184, %176 : vector<8x32xf32>
    %186 = arith.mulf %185, %183 : vector<8x32xf32>
    %187 = arith.mulf %176, %164 : vector<8x32xf32>
    %188 = arith.addf %186, %187 : vector<8x32xf32>
    %c16_69 = arith.constant 16 : index
    %c0_70 = arith.constant 0 : index
    %189 = vector.load %arg14[%c16_69, %c0_70] : memref<24x32xf32, #tpu.memory_space<vmem>>, vector<8x32xf32>
    tpu.vector_store %arg14[%c16_69, %c0_70], %188 {strides = array<i32>} : memref<24x32xf32, #tpu.memory_space<vmem>>, vector<8x32xf32>,
    %c1_71 = arith.constant 1 : index
    %c0_72 = arith.constant 0 : index
    %c0_73 = arith.constant 0 : index
    %190 = vector.load %arg12[%c1_71, %c0_72, %c0_73] : memref<2x8x32xf32, #tpu.memory_space<vmem>>, vector<1x8x32xf32>
    %191 = vector.shape_cast %190 : vector<1x8x32xf32> to vector<8x32xf32>
    %192 = vector.shape_cast %188 : vector<8x32xf32> to vector<1x8x32xf32>
    tpu.vector_store %arg12[%c1_71, %c0_72, %c0_73], %192 {strides = array<i32>} : memref<2x8x32xf32, #tpu.memory_space<vmem>>, vector<1x8x32xf32>,
    %c0_74 = arith.constant 0 : index
    %c0_75 = arith.constant 0 : index
    %193 = vector.load %arg14[%c0_74, %c0_75] : memref<24x32xf32, #tpu.memory_space<vmem>>, vector<24x32xf32>
    %c0_76 = arith.constant 0 : index
    %c0_77 = arith.constant 0 : index
    %194 = vector.load %arg9[%c0_76, %c0_77] : memref<32x16xf32, #tpu.memory_space<vmem>>, vector<32x16xf32>
    %cst_78 = arith.constant dense<0.000000e+00> : vector<24x16xf32>
    %195 = tpu.matmul %193, %194, %cst_78 {dimension_numbers = #tpu.dot_dimension_numbers<[1], [0], [0], [1], [0, 0, 1, 1], [], []>} : vector<24x32xf32>, vector<32x16xf32>, vector<24x16xf32> -> vector<24x16xf32>
    %c0_79 = arith.constant 0 : index
    %c0_80 = arith.constant 0 : index
    %196 = vector.load %arg10[%c0_79, %c0_80] : memref<1x16xf32, #tpu.memory_space<vmem>>, vector<1x16xf32>
    %197 = vector.broadcast %196 : vector<1x16xf32> to vector<24x16xf32>
    %198 = arith.addf %195, %197 : vector<24x16xf32>
    %c0_81 = arith.constant 0 : index
    %c0_82 = arith.constant 0 : index
    %199 = vector.load %arg11[%c0_81, %c0_82] : memref<24x16xf32, #tpu.memory_space<vmem>>, vector<24x16xf32>
    tpu.vector_store %arg11[%c0_81, %c0_82], %198 {strides = array<i32>} : memref<24x16xf32, #tpu.memory_space<vmem>>, vector<24x16xf32>,
    return
  }
  func.func @transform_0(%arg0: i32, %arg1: i32) -> (i32, i32) {
    %c3_i32 = arith.constant 3 : i32
    %0 = arith.muli %arg0, %c3_i32 : i32
    %1 = arith.addi %0, %arg1 : i32
    %c0_i32 = arith.constant 0 : i32
    %c0_i32_0 = arith.constant 0 : i32
    return %1, %c0_i32 : i32, i32
  }
  func.func @transform_1(%arg0: i32, %arg1: i32) -> (i32, i32, i32) {
    %c0_i32 = arith.constant 0 : i32
    %c0_i32_0 = arith.constant 0 : i32
    %c0_i32_1 = arith.constant 0 : i32
    %c0_i32_2 = arith.constant 0 : i32
    return %c0_i32, %c0_i32_0, %c0_i32_1 : i32, i32, i32
  }
  func.func @transform_2(%arg0: i32, %arg1: i32) -> (i32, i32, i32) {
    %c0_i32 = arith.constant 0 : i32
    %c0_i32_0 = arith.constant 0 : i32
    %c0_i32_1 = arith.constant 0 : i32
    %c0_i32_2 = arith.constant 0 : i32
    return %c0_i32, %c0_i32_0, %c0_i32_1 : i32, i32, i32
  }
  func.func @transform_3(%arg0: i32, %arg1: i32) -> (i32, i32, i32) {
    %c0_i32 = arith.constant 0 : i32
    %c0_i32_0 = arith.constant 0 : i32
    %c0_i32_1 = arith.constant 0 : i32
    %c0_i32_2 = arith.constant 0 : i32
    return %c0_i32, %c0_i32_0, %c0_i32_1 : i32, i32, i32
  }
  func.func @transform_4(%arg0: i32, %arg1: i32) -> (i32, i32, i32) {
    %c0_i32 = arith.constant 0 : i32
    %c0_i32_0 = arith.constant 0 : i32
    %c0_i32_1 = arith.constant 0 : i32
    %c0_i32_2 = arith.constant 0 : i32
    return %c0_i32, %c0_i32_0, %c0_i32_1 : i32, i32, i32
  }
  func.func @transform_5(%arg0: i32, %arg1: i32) -> (i32, i32, i32) {
    %c0_i32 = arith.constant 0 : i32
    %c0_i32_0 = arith.constant 0 : i32
    %c0_i32_1 = arith.constant 0 : i32
    %c0_i32_2 = arith.constant 0 : i32
    return %c0_i32, %c0_i32_0, %c0_i32_1 : i32, i32, i32
  }
  func.func @transform_6(%arg0: i32, %arg1: i32) -> (i32, i32, i32) {
    %c0_i32 = arith.constant 0 : i32
    %c0_i32_0 = arith.constant 0 : i32
    %c0_i32_1 = arith.constant 0 : i32
    %c0_i32_2 = arith.constant 0 : i32
    return %c0_i32, %c0_i32_0, %c0_i32_1 : i32, i32, i32
  }
  func.func @transform_7(%arg0: i32, %arg1: i32) -> (i32, i32) {
    %c0_i32 = arith.constant 0 : i32
    %c0_i32_0 = arith.constant 0 : i32
    %c0_i32_1 = arith.constant 0 : i32
    return %c0_i32, %c0_i32_0 : i32, i32
  }
  func.func @transform_8(%arg0: i32, %arg1: i32) -> (i32, i32) {
    %c0_i32 = arith.constant 0 : i32
    %c0_i32_0 = arith.constant 0 : i32
    %c0_i32_1 = arith.constant 0 : i32
    return %c0_i32, %c0_i32_0 : i32, i32
  }
  func.func @transform_9(%arg0: i32, %arg1: i32) -> (i32, i32) {
    %c3_i32 = arith.constant 3 : i32
    %0 = arith.muli %arg0, %c3_i32 : i32
    %1 = arith.addi %0, %arg1 : i32
    %c0_i32 = arith.constant 0 : i32
    %c0_i32_0 = arith.constant 0 : i32
    return %1, %c0_i32 : i32, i32
  }
}

</mosaic_0001>

<llo_original>
// kernel: tpu_custom_call.1
$region0: #{tpu_custom_call.1}
  #allocation0 [shape = 'u32[]', space=smem, size = 0x4, offset = 0x4, fixed_abs, tag = 'smem constant byte address 0x4 - core index']
  #allocation1 [shape = 'u32[144,128]{1,0:T(1,128)}', space=vmem, size = 0x12000, scoped, tag = 'internal scratch']
  #allocation2 [shape = 'f32[2,8,32]{2,1,0:T(8,128)}', space=vmem, size = 0x2000, scoped, tag = 'scratch operand']
  #allocation3 [shape = 'f32[24,32]{1,0:T(8,128)}', space=vmem, size = 0x3000, scoped, tag = 'scratch operand']
  #allocation4 [shape = 'f32[24,32]{1,0:T(8,128)}', space=vmem, size = 0x3000, scoped, tag = 'scratch operand']
  %s0 = inlined_call_operand.vmem [shape: f32[72,32], index: 0, kind: input, shape index: {}]
  %s1 = inlined_call_operand.vmem [shape: f32[2,1,32], index: 1, kind: input, shape index: {}]
  %s2 = inlined_call_operand.vmem [shape: f32[2,32,96], index: 2, kind: input, shape index: {}]
  %s3 = inlined_call_operand.vmem [shape: f32[2,32,96], index: 3, kind: input, shape index: {}]
  %s4 = inlined_call_operand.vmem [shape: f32[2,1,64], index: 4, kind: input, shape index: {}]
  %s5 = inlined_call_operand.vmem [shape: f32[2,1,32], index: 5, kind: input, shape index: {}]
  %s6 = inlined_call_operand.vmem [shape: f32[2,1,32], index: 6, kind: input, shape index: {}]
  %s7 = inlined_call_operand.vmem [shape: f32[32,16], index: 7, kind: input, shape index: {}]
  %s8 = inlined_call_operand.vmem [shape: f32[1,16], index: 8, kind: input, shape index: {}]
  %s9 = inlined_call_operand.vmem [shape: f32[72,16], index: 9, kind: output, shape index: {}]
  %s10 = sld [smem:[#allocation0]]
  $region73: #{tpu_custom_call.1} parent=0
    _
  %s12 = ssub.s32 1, %s10
  %s13 = scalar_select 0, %s12, %s10
  loop: start=0, step=1, limit=5
  $region2: #{tpu_custom_call.1} parent=0 // loop_pre_header
    _
  $region3: #{tpu_custom_call.1} parent=0 // loop_header
    %s15 = sphi 0, %s19
    %p16 = scmp.ge.s32.totalorder %s15, 5
    %s22 = sphi 0, %s34
    %s23 = sphi 0, %s30
    %s24 = sphi 0, %s22
    %s25 = sphi 0, %s23
    %s26 = sphi 0, %s24
    %s27 = sphi 0, %s25
    %s41 = sphi 0, %s43
    %s44 = sphi 0, %s41
    %s45 = sphi 0, %s44
    %s61 = sphi 0, %s45
    %s65 = sphi 0, %s65
    %s67 = sphi 0, %s65
    %s68 = sphi 0, %s67
    %s82 = sphi 0, %s68
    %s86 = sphi 0, %s86
    %s88 = sphi 0, %s86
    %s89 = sphi 0, %s88
    %s103 = sphi 0, %s89
    %s107 = sphi 0, %s107
    %s109 = sphi 0, %s107
    %s110 = sphi 0, %s109
    %s124 = sphi 0, %s110
    %s128 = sphi 0, %s128
    %s130 = sphi 0, %s128
    %s131 = sphi 0, %s130
    %s145 = sphi 0, %s131
    %s149 = sphi 0, %s149
    %s151 = sphi 0, %s149
    %s152 = sphi 0, %s151
    %s166 = sphi 0, %s152
    %s170 = sphi 0, %s170
    %s172 = sphi 0, %s170
    %s173 = sphi 0, %s172
    %s187 = sphi 0, %s173
    %s191 = sphi 0, %s191
    %s193 = sphi 0, %s191
    %s194 = sphi 0, %s193
    %s208 = sphi 0, %s194
    %s212 = sphi 0, %s212
    %s214 = sphi 0, %s212
    %s215 = sphi 0, %s214
    %s229 = sphi 0, %s215
    %s239 = sphi 0, %s241
    %s242 = sphi 0, %s239
    %s243 = sphi 0, %s242
    %s259 = sphi 0, %s243
  $region4: #{tpu_custom_call.1} parent=0 // loop_header_branch
    %18 = sbr.rel (%p16) target = $region8
  $region5: #{tpu_custom_call.1} parent=0 // loop_body
    %s20 = ssub.s32 %s15, 1
    %s21 = ssub.s32 %s15, 2
    %s28 = sadd.s32 1, %s23
    %p29 = scmp.ge.s32.totalorder %s28, 3
    %s30 = scalar_select %p29, 0, %s28
    %s31 = sadd.s32 1, %s22
    %s32 = scalar_select %p29, %s31, %s22
    %p33 = scmp.ge.s32.totalorder %s32, 1
    %s34 = scalar_select %p33, 0, %s32
    %s35 = smul.u32 %s22, 3
    %s36 = sadd.s32 %s35, %s23
    %s37 = smul.u32 %s34, 3
    %s38 = sadd.s32 %s37, %s30
    %s39 = ssub.s32 %s36, %s38
    %p40 = scmp.eq.s32.totalorder %s39, 0
    %s42 = sadd.s32 %s41, 1
    %s43 = scalar_select %p40, %s41, %s42
    %p46 = pneg %p40
    %p47 = scmp.eq.s32.totalorder %s15, 2
    %p48 = por %p46, %p47
    %p49 = scmp.ne.s32.totalorder %s41, %s44
    %p50 = scmp.eq.s32.totalorder %s15, 0
    %p51 = por %p49, %p50
    %p52 = scmp.ne.s32.totalorder %s41, %s44
    %p53 = scmp.eq.s32.totalorder %s20, 2
    %p54 = por %p52, %p53
    %p55 = scmp.ne.s32.totalorder %s44, %s45
    %p56 = scmp.eq.s32.totalorder %s20, 0
    %p57 = por %p55, %p56
    %p58 = scmp.ne.s32.totalorder %s44, %s45
    %p59 = scmp.eq.s32.totalorder %s21, 2
    %p60 = por %p58, %p59
    %p62 = scmp.ne.s32.totalorder %s45, %s61
    %p63 = scmp.eq.s32.totalorder %s21, 0
    %p64 = por %p62, %p63
    %s66 = sadd.s32 %s65, 1
    %p69 = scmp.eq.s32.totalorder %s15, 2
    %p70 = scmp.ne.s32.totalorder %s65, %s67
    %p71 = scmp.eq.s32.totalorder %s15, 0
    %p72 = por %p70, %p71
    %p73 = scmp.ne.s32.totalorder %s65, %s67
    %p74 = scmp.eq.s32.totalorder %s20, 2
    %p75 = por %p73, %p74
    %p76 = scmp.ne.s32.totalorder %s67, %s68
    %p77 = scmp.eq.s32.totalorder %s20, 0
    %p78 = por %p76, %p77
    %p79 = scmp.ne.s32.totalorder %s67, %s68
    %p80 = scmp.eq.s32.totalorder %s21, 2
    %p81 = por %p79, %p80
    %p83 = scmp.ne.s32.totalorder %s68, %s82
    %p84 = scmp.eq.s32.totalorder %s21, 0
    %p85 = por %p83, %p84
    %s87 = sadd.s32 %s86, 1
    %p90 = scmp.eq.s32.totalorder %s15, 2
    %p91 = scmp.ne.s32.totalorder %s86, %s88
    %p92 = scmp.eq.s32.totalorder %s15, 0
    %p93 = por %p91, %p92
    %p94 = scmp.ne.s32.totalorder %s86, %s88
    %p95 = scmp.eq.s32.totalorder %s20, 2
    %p96 = por %p94, %p95
    %p97 = scmp.ne.s32.totalorder %s88, %s89
    %p98 = scmp.eq.s32.totalorder %s20, 0
    %p99 = por %p97, %p98
    %p100 = scmp.ne.s32.totalorder %s88, %s89
    %p101 = scmp.eq.s32.totalorder %s21, 2
    %p102 = por %p100, %p101
    %p104 = scmp.ne.s32.totalorder %s89, %s103
    %p105 = scmp.eq.s32.totalorder %s21, 0
    %p106 = por %p104, %p105
    %s108 = sadd.s32 %s107, 1
    %p111 = scmp.eq.s32.totalorder %s15, 2
    %p112 = scmp.ne.s32.totalorder %s107, %s109
    %p113 = scmp.eq.s32.totalorder %s15, 0
    %p114 = por %p112, %p113
    %p115 = scmp.ne.s32.totalorder %s107, %s109
    %p116 = scmp.eq.s32.totalorder %s20, 2
    %p117 = por %p115, %p116
    %p118 = scmp.ne.s32.totalorder %s109, %s110
    %p119 = scmp.eq.s32.totalorder %s20, 0
    %p120 = por %p118, %p119
    %p121 = scmp.ne.s32.totalorder %s109, %s110
    %p122 = scmp.eq.s32.totalorder %s21, 2
    %p123 = por %p121, %p122
    %p125 = scmp.ne.s32.totalorder %s110, %s124
    %p126 = scmp.eq.s32.totalorder %s21, 0
    %p127 = por %p125, %p126
    %s129 = sadd.s32 %s128, 1
    %p132 = scmp.eq.s32.totalorder %s15, 2
    %p133 = scmp.ne.s32.totalorder %s128, %s130
    %p134 = scmp.eq.s32.totalorder %s15, 0
    %p135 = por %p133, %p134
    %p136 = scmp.ne.s32.totalorder %s128, %s130
    %p137 = scmp.eq.s32.totalorder %s20, 2
    %p138 = por %p136, %p137
    %p139 = scmp.ne.s32.totalorder %s130, %s131
    %p140 = scmp.eq.s32.totalorder %s20, 0
    %p141 = por %p139, %p140
    %p142 = scmp.ne.s32.totalorder %s130, %s131
    %p143 = scmp.eq.s32.totalorder %s21, 2
    %p144 = por %p142, %p143
    %p146 = scmp.ne.s32.totalorder %s131, %s145
    %p147 = scmp.eq.s32.totalorder %s21, 0
    %p148 = por %p146, %p147
    %s150 = sadd.s32 %s149, 1
    %p153 = scmp.eq.s32.totalorder %s15, 2
    %p154 = scmp.ne.s32.totalorder %s149, %s151
    %p155 = scmp.eq.s32.totalorder %s15, 0
    %p156 = por %p154, %p155
    %p157 = scmp.ne.s32.totalorder %s149, %s151
    %p158 = scmp.eq.s32.totalorder %s20, 2
    %p159 = por %p157, %p158
    %p160 = scmp.ne.s32.totalorder %s151, %s152
    %p161 = scmp.eq.s32.totalorder %s20, 0
    %p162 = por %p160, %p161
    %p163 = scmp.ne.s32.totalorder %s151, %s152
    %p164 = scmp.eq.s32.totalorder %s21, 2
    %p165 = por %p163, %p164
    %p167 = scmp.ne.s32.totalorder %s152, %s166
    %p168 = scmp.eq.s32.totalorder %s21, 0
    %p169 = por %p167, %p168
    %s171 = sadd.s32 %s170, 1
    %p174 = scmp.eq.s32.totalorder %s15, 2
    %p175 = scmp.ne.s32.totalorder %s170, %s172
    %p176 = scmp.eq.s32.totalorder %s15, 0
    %p177 = por %p175, %p176
    %p178 = scmp.ne.s32.totalorder %s170, %s172
    %p179 = scmp.eq.s32.totalorder %s20, 2
    %p180 = por %p178, %p179
    %p181 = scmp.ne.s32.totalorder %s172, %s173
    %p182 = scmp.eq.s32.totalorder %s20, 0
    %p183 = por %p181, %p182
    %p184 = scmp.ne.s32.totalorder %s172, %s173
    %p185 = scmp.eq.s32.totalorder %s21, 2
    %p186 = por %p184, %p185
    %p188 = scmp.ne.s32.totalorder %s173, %s187
    %p189 = scmp.eq.s32.totalorder %s21, 0
    %p190 = por %p188, %p189
    %s192 = sadd.s32 %s191, 1
    %p195 = scmp.eq.s32.totalorder %s15, 2
    %p196 = scmp.ne.s32.totalorder %s191, %s193
    %p197 = scmp.eq.s32.totalorder %s15, 0
    %p198 = por %p196, %p197
    %p199 = scmp.ne.s32.totalorder %s191, %s193
    %p200 = scmp.eq.s32.totalorder %s20, 2
    %p201 = por %p199, %p200
    %p202 = scmp.ne.s32.totalorder %s193, %s194
    %p203 = scmp.eq.s32.totalorder %s20, 0
    %p204 = por %p202, %p203
    %p205 = scmp.ne.s32.totalorder %s193, %s194
    %p206 = scmp.eq.s32.totalorder %s21, 2
    %p207 = por %p205, %p206
    %p209 = scmp.ne.s32.totalorder %s194, %s208
    %p210 = scmp.eq.s32.totalorder %s21, 0
    %p211 = por %p209, %p210
    %s213 = sadd.s32 %s212, 1
    %p216 = scmp.eq.s32.totalorder %s15, 2
    %p217 = scmp.ne.s32.totalorder %s212, %s214
    %p218 = scmp.eq.s32.totalorder %s15, 0
    %p219 = por %p217, %p218
    %p220 = scmp.ne.s32.totalorder %s212, %s214
    %p221 = scmp.eq.s32.totalorder %s20, 2
    %p222 = por %p220, %p221
    %p223 = scmp.ne.s32.totalorder %s214, %s215
    %p224 = scmp.eq.s32.totalorder %s20, 0
    %p225 = por %p223, %p224
    %p226 = scmp.ne.s32.totalorder %s214, %s215
    %p227 = scmp.eq.s32.totalorder %s21, 2
    %p228 = por %p226, %p227
    %p230 = scmp.ne.s32.totalorder %s215, %s229
    %p231 = scmp.eq.s32.totalorder %s21, 0
    %p232 = por %p230, %p231
    %s233 = smul.u32 %s22, 3
    %s234 = sadd.s32 %s233, %s23
    %s235 = smul.u32 %s34, 3
    %s236 = sadd.s32 %s235, %s30
    %s237 = ssub.s32 %s234, %s236
    %p238 = scmp.eq.s32.totalorder %s237, 0
    %s240 = sadd.s32 %s239, 1
    %s241 = scalar_select %p238, %s239, %s240
    %p244 = pneg %p238
    %p245 = scmp.eq.s32.totalorder %s15, 2
    %p246 = por %p244, %p245
    %p247 = scmp.ne.s32.totalorder %s239, %s242
    %p248 = scmp.eq.s32.totalorder %s15, 0
    %p249 = por %p247, %p248
    %p250 = scmp.ne.s32.totalorder %s239, %s242
    %p251 = scmp.eq.s32.totalorder %s20, 2
    %p252 = por %p250, %p251
    %p253 = scmp.ne.s32.totalorder %s242, %s243
    %p254 = scmp.eq.s32.totalorder %s20, 0
    %p255 = por %p253, %p254
    %p256 = scmp.ne.s32.totalorder %s242, %s243
    %p257 = scmp.eq.s32.totalorder %s21, 2
    %p258 = por %p256, %p257
    %p260 = scmp.ne.s32.totalorder %s243, %s259
    %p261 = scmp.eq.s32.totalorder %s21, 0
    %p262 = por %p260, %p261
    %p263 = scmp.le.s32.totalorder 1, %s15
    %p264 = scmp.lt.s32.totalorder %s15, 4
    %p265 = pnand %p263, %p264
    %p266 = pneg %p265
    // Predicated region
    $region9: #{tpu_custom_call.1} parent=5 // pred_check
      _
    $region10: #{tpu_custom_call.1} parent=5 // pred_check_branch
      %268 = sbr.rel (%p265) target = $region12
    $region11: #{tpu_custom_call.1} parent=5 // pred_region
      %s269 = ssub.s32 %s15, 1
      // Predicated region
      $region13: #{tpu_custom_call.1} parent=11 // pred_check
        %p270 = pneg %p78
      $region14: #{tpu_custom_call.1} parent=11 // pred_check_branch
        %272 = sbr.rel (%p270) target = $region16
      $region15: #{tpu_custom_call.1} parent=11 // pred_region
        _
      $region16: #{tpu_custom_call.1} parent=11 // pred_fallthru
        _
      // Predicated region
      $region17: #{tpu_custom_call.1} parent=11 // pred_check
        %p273 = pneg %p99
      $region18: #{tpu_custom_call.1} parent=11 // pred_check_branch
        %275 = sbr.rel (%p273) target = $region20
      $region19: #{tpu_custom_call.1} parent=11 // pred_region
        _
      $region20: #{tpu_custom_call.1} parent=11 // pred_fallthru
        _
      // Predicated region
      $region21: #{tpu_custom_call.1} parent=11 // pred_check
        %p276 = pneg %p120
      $region22: #{tpu_custom_call.1} parent=11 // pred_check_branch
        %278 = sbr.rel (%p276) target = $region24
      $region23: #{tpu_custom_call.1} parent=11 // pred_region
        _
      $region24: #{tpu_custom_call.1} parent=11 // pred_fallthru
        _
      // Predicated region
      $region25: #{tpu_custom_call.1} parent=11 // pred_check
        %p279 = pneg %p141
      $region26: #{tpu_custom_call.1} parent=11 // pred_check_branch
        %281 = sbr.rel (%p279) target = $region28
      $region27: #{tpu_custom_call.1} parent=11 // pred_region
        _
      $region28: #{tpu_custom_call.1} parent=11 // pred_fallthru
        _
      // Predicated region
      $region29: #{tpu_custom_call.1} parent=11 // pred_check
        %p282 = pneg %p162
      $region30: #{tpu_custom_call.1} parent=11 // pred_check_branch
        %284 = sbr.rel (%p282) target = $region32
      $region31: #{tpu_custom_call.1} parent=11 // pred_region
        _
      $region32: #{tpu_custom_call.1} parent=11 // pred_fallthru
        _
      // Predicated region
      $region33: #{tpu_custom_call.1} parent=11 // pred_check
        %p285 = pneg %p183
      $region34: #{tpu_custom_call.1} parent=11 // pred_check_branch
        %287 = sbr.rel (%p285) target = $region36
      $region35: #{tpu_custom_call.1} parent=11 // pred_region
        _
      $region36: #{tpu_custom_call.1} parent=11 // pred_fallthru
        _
      // Predicated region
      $region37: #{tpu_custom_call.1} parent=11 // pred_check
        %p288 = pneg %p204
      $region38: #{tpu_custom_call.1} parent=11 // pred_check_branch
        %290 = sbr.rel (%p288) target = $region40
      $region39: #{tpu_custom_call.1} parent=11 // pred_region
        _
      $region40: #{tpu_custom_call.1} parent=11 // pred_fallthru
        _
      // Predicated region
      $region41: #{tpu_custom_call.1} parent=11 // pred_check
        %p291 = pneg %p225
      $region42: #{tpu_custom_call.1} parent=11 // pred_check_branch
        %293 = sbr.rel (%p291) target = $region44
      $region43: #{tpu_custom_call.1} parent=11 // pred_region
        _
      $region44: #{tpu_custom_call.1} parent=11 // pred_fallthru
        _
    $region12: #{tpu_custom_call.1} parent=5 // pred_fallthru
      _
    %p294 = scmp.lt.s32.totalorder %s15, 3
    // Predicated region
    $region45: #{tpu_custom_call.1} parent=5 // pred_check
      %p295 = pneg %p294
    $region46: #{tpu_custom_call.1} parent=5 // pred_check_branch
      %297 = sbr.rel (%p295) target = $region48
    $region47: #{tpu_custom_call.1} parent=5 // pred_region
      // Predicated region
      $region49: #{tpu_custom_call.1} parent=47 // pred_check
        %p298 = pneg %p51
      $region50: #{tpu_custom_call.1} parent=47 // pred_check_branch
        %300 = sbr.rel (%p298) target = $region52
      $region51: #{tpu_custom_call.1} parent=47 // pred_region
        %s301 = smul.u32 %s22, 3
        %s302 = sadd.s32 %s301, %s23
        %s303 = smul.u32 3, %s302
        %p304 = scmp.lt.s32.totalorder %s303, 8
        %s305 = scalar_select %p304, %s303, 8
        %s306 = smul.addr %s305, 8
        %s307 = scalar_lea.vmem %s0, %s306
        %s308 = smul.u32 %s22, 3
        %s309 = sadd.s32 %s308, %s23
        %s310 = smul.u32 3, %s309
      $region52: #{tpu_custom_call.1} parent=47 // pred_fallthru
        _
    $region48: #{tpu_custom_call.1} parent=5 // pred_fallthru
      _
    %p311 = scmp.le.s32.totalorder 1, %s15
    %p312 = scmp.lt.s32.totalorder %s15, 4
    %p313 = pnand %p311, %p312
    %p314 = pneg %p313
    // Predicated region
    $region53: #{tpu_custom_call.1} parent=5 // pred_check
      _
    $region54: #{tpu_custom_call.1} parent=5 // pred_check_branch
      %316 = sbr.rel (%p313) target = $region56
    $region55: #{tpu_custom_call.1} parent=5 // pred_region
      %s317 = ssub.s32 %s15, 1
      %s318 = smul.u32 %s24, 3
      %s319 = sadd.s32 %s318, %s25
      %s320 = smul.u32 3, %s319
      %p321 = scmp.lt.s32.totalorder %s320, 8
      %s322 = scalar_select %p321, %s320, 8
      %s323 = smul.addr %s322, 8
      %s324 = scalar_lea.vmem %s0, %s323
      %p325 = pneg %p57
      %p326 = pneg %p54
      %p327 = pneg %p78
      %p328 = pneg %p75
      %p329 = pneg %p99
      %p330 = pneg %p96
      %p331 = pneg %p120
      %p332 = pneg %p117
      %p333 = pneg %p141
      %p334 = pneg %p138
      %p335 = pneg %p162
      %p336 = pneg %p159
      %p337 = pneg %p183
      %p338 = pneg %p180
      %p339 = pneg %p204
      %p340 = pneg %p201
      %p341 = pneg %p225
      %p342 = pneg %p222
      %p343 = pneg %p255
      %p344 = pneg %p252
      %s345 = smul.u32 %s24, 3
      %s346 = sadd.s32 %s345, %s25
      %s347 = smul.u32 3, %s346
      %p348 = scmp.lt.s32.totalorder %s347, 8
      %s349 = scalar_select %p348, %s347, 8
      %s350 = smul.addr %s349, 8
      %s351 = scalar_lea.vmem %s9, %s350
      %s352 = smul.u32 %s24, 3
      %s353 = sadd.s32 %s352, %s25
      %s354 = smul.u32 3, %s353
      %p355 = scmp.lt.s32.totalorder %s354, 8
      %s356 = scalar_select %p355, %s354, 8
      %s357 = smul.addr %s356, 8
      %s358 = scalar_lea.vmem %s0, %s357
      %s359 = smul.u32 %s24, 3
      %s360 = sadd.s32 %s359, %s25
      %s361 = smul.u32 3, %s360
      %s362 = smul.u32 %s24, 3
      %s363 = sadd.s32 %s362, %s25
      %s364 = smul.u32 3, %s363
      %p365 = scmp.lt.s32.totalorder %s364, 8
      %s366 = scalar_select %p365, %s364, 8
      %s367 = smul.addr %s366, 8
      %s368 = scalar_lea.vmem %s9, %s367
      %s369 = smul.u32 %s24, 3
      %s370 = sadd.s32 %s369, %s25
      %s371 = smul.u32 3, %s370
      %p372 = scmp.eq.s32.totalorder %s25, 0
      // Predicated region
      $region57: #{tpu_custom_call.1} parent=55 // pred_check
        %p373 = pneg %p372
      $region58: #{tpu_custom_call.1} parent=55 // pred_check_branch
        %375 = sbr.rel (%p373) target = $region60
      $region59: #{tpu_custom_call.1} parent=55 // pred_region
        %v376 = vld [vmem:[%s1] sm:$0x1]
        %v378 = vlaneseq
        %v379 = vshrl.u32 %v378, 7
        %v380 = vsub.s32 0, %v379
        %v381 = vrot.slane %v376, %v380
        %vm383 = vcmask 261120
        %384 = vst.msk [vmem:[#allocation2] sm:$0xff] %vm383, %v381
        %s385 = scalar_lea.vmem %s1, 1
        %v386 = vld [vmem:[%s385] sm:$0x1]
        %v388 = vlaneseq
        %v389 = vshrl.u32 %v388, 7
        %v390 = vsub.s32 0, %v389
        %v391 = vrot.slane %v386, %v390
        %s393 = scalar_lea.vmem [#allocation2], 8
        %394 = vst.msk [vmem:[%s393] sm:$0xff] %vm383, %v391
      $region60: #{tpu_custom_call.1} parent=55 // pred_fallthru
        _
      %v395 = vld [vmem:[%s358] sm:$0xff]
      %v396 = vld [vmem:[%s358 + $0x8] sm:$0xff]
      %v397 = vld [vmem:[%s358 + $0x10] sm:$0xff]
      %v398 = vld [vmem:[%s2] sm:$0xff]
      %v399 = vld [vmem:[%s2 + $0x8] sm:$0xff]
      %v400 = vld [vmem:[%s2 + $0x10] sm:$0xff]
      %v401 = vld [vmem:[%s2 + $0x18] sm:$0xff]
      %vm402 = vcmask 261120
      %v404 = vsel %vm402, %v395, 0
      %v407 = vsel %vm402, %v396, 0
      %v410 = vsel %vm402, %v397, 0
      %412 = vmatprep.subr.mxu0 0.0
      %413 = vmatpush1.msra.mxu0 0.0
      %414 = vmatprep.subr.mxu0 0.0
      %415 = vmatpush1.msra.mxu0 0.0
      %416 = vmatprep.subr.mxu0 0.0
      %417 = vmatpush1.msra.mxu0 0.0
      %418 = vmatprep.subr.mxu0 0.0
      %419 = vmatpush1.msra.mxu0 0.0
      %420 = vmatprep.subr.mxu0 0.0
      %421 = vmatpush1.msra.mxu0 0.0
      %422 = vmatprep.subr.mxu0 0.0
      %423 = vmatpush1.msra.mxu0 0.0
      %424 = vmatprep.subr.mxu0 0.0
      %425 = vmatpush1.msra.mxu0 0.0
      %426 = vmatprep.subr.mxu0 0.0
      %427 = vmatpush1.msra.mxu0 0.0
      %428 = vmatprep.subr.mxu0 0.0
      %429 = vmatpush1.msra.mxu0 0.0
      %430 = vmatprep.subr.mxu0 0.0
      %431 = vmatpush1.msra.mxu0 0.0
      %432 = vmatprep.subr.mxu0 0.0
      %433 = vmatpush1.msra.mxu0 0.0
      %434 = vmatprep.subr.mxu0 0.0
      %435 = vmatpush1.msra.mxu0 0.0
      %436 = vmatprep.subr.mxu0 0.0
      %437 = vmatpush1.msra.mxu0 %v401
      %438 = vmatprep.subr.mxu0 0.0
      %439 = vmatpush1.msra.mxu0 %v400
      %440 = vmatprep.subr.mxu0 0.0
      %441 = vmatpush1.msra.mxu0 %v399
      %442 = vmatprep.subr.mxu0 0.0
      %443 = vmatpush1.msra.mxu0 %v398
      %444 = vmatprep.subr.mxu0 0.0
      %445 = vmatpush2.msra.mxu0 0.0
      %446 = vmatprep.subr.mxu0 0.0
      %447 = vmatpush2.msra.mxu0 0.0
      %448 = vmatprep.subr.mxu0 0.0
      %449 = vmatpush2.msra.mxu0 0.0
      %450 = vmatprep.subr.mxu0 0.0
      %451 = vmatpush2.msra.mxu0 0.0
      %452 = vmatprep.subr.mxu0 0.0
      %453 = vmatpush2.msra.mxu0 0.0
      %454 = vmatprep.subr.mxu0 0.0
      %455 = vmatpush2.msra.mxu0 0.0
      %456 = vmatprep.subr.mxu0 0.0
      %457 = vmatpush2.msra.mxu0 0.0
      %458 = vmatprep.subr.mxu0 0.0
      %459 = vmatpush2.msra.mxu0 0.0
      %460 = vmatprep.subr.mxu0 0.0
      %461 = vmatpush2.msra.mxu0 0.0
      %462 = vmatprep.subr.mxu0 0.0
      %463 = vmatpush2.msra.mxu0 0.0
      %464 = vmatprep.subr.mxu0 0.0
      %465 = vmatpush2.msra.mxu0 0.0
      %466 = vmatprep.subr.mxu0 0.0
      %467 = vmatpush2.msra.mxu0 0.0
      %468 = vmatprep.subr.mxu0 0.0
      %469 = vmatpush2.msra.mxu0 0.0
      %470 = vmatprep.subr.mxu0 0.0
      %471 = vmatpush2.msra.mxu0 0.0
      %472 = vmatprep.subr.mxu0 0.0
      %473 = vmatpush2.msra.mxu0 0.0
      %474 = vmatprep.subr.mxu0 0.0
      %475 = vmatpush2.msra.mxu0 0.0
      %476 = vmatprep.mubr.f32.mxu0 0.0
      %477 = vmatmul.mubr.f32.gmra.mxu0 %v404
      %v478 = vpop.f32.mrf.mxu0
      %v479 = vadd.f32 0.0, %v478
      %v480 = vpop.f32.mrf.mxu0
      %481 = vmatprep.mubr.f32.mxu0 0.0
      %482 = vmatmul.mubr.f32.gmra.mxu0 %v407
      %v483 = vpop.f32.mrf.mxu0
      %v484 = vadd.f32 0.0, %v483
      %v485 = vpop.f32.mrf.mxu0
      %486 = vmatprep.mubr.f32.mxu0 0.0
      %487 = vmatmul.mubr.f32.gmra.mxu0 %v410
      %v488 = vpop.f32.mrf.mxu0
      %v489 = vadd.f32 0.0, %v488
      %v490 = vpop.f32.mrf.mxu0
      %491 = vdwg.mxu0
      %v492 = vld [vmem:[%s4] sm:$0x1]
      %v494 = vlaneseq
      %v495 = vshrl.u32 %v494, 7
      %v496 = vsub.s32 0, %v495
      %v497 = vrot.slane %v492, %v496
      %v499 = vadd.f32 %v479, %v497
      %v500 = vadd.f32 %v484, %v497
      %v501 = vadd.f32 %v489, %v497
      %v502 = vld [vmem:[%s5] sm:$0x1]
      %v504 = vlaneseq
      %v505 = vshrl.u32 %v504, 7
      %v506 = vsub.s32 0, %v505
      %v507 = vrot.slane %v502, %v506
      %508 = vrot.lane.b32.xlu0 %v507, 64
      %v509 = vpop.permute.xlu0 %508
      %v511 = vadd.f32 %v479, %v509
      %v512 = vadd.f32 %v484, %v509
      %v513 = vadd.f32 %v489, %v509
      %v514 = vld [vmem:[%s3] sm:$0xff]
      %v515 = vld [vmem:[%s3 + $0x8] sm:$0xff]
      %v516 = vld [vmem:[%s3 + $0x10] sm:$0xff]
      %v517 = vld [vmem:[%s3 + $0x18] sm:$0xff]
      %v518 = vld [vmem:[%s6] sm:$0x1]
      %v519 = vld [vmem:[#allocation2] sm:$0xff]
      %v521 = vsel %vm402, %v519, 0
      %523 = vmatprep.subr.mxu0 0.0
      %524 = vmatpush1.msra.mxu0 0.0
      %525 = vmatprep.subr.mxu0 0.0
      %526 = vmatpush1.msra.mxu0 0.0
      %527 = vmatprep.subr.mxu0 0.0
      %528 = vmatpush1.msra.mxu0 0.0
      %529 = vmatprep.subr.mxu0 0.0
      %530 = vmatpush1.msra.mxu0 0.0
      %531 = vmatprep.subr.mxu0 0.0
      %532 = vmatpush1.msra.mxu0 0.0
      %533 = vmatprep.subr.mxu0 0.0
      %534 = vmatpush1.msra.mxu0 0.0
      %535 = vmatprep.subr.mxu0 0.0
      %536 = vmatpush1.msra.mxu0 0.0
      %537 = vmatprep.subr.mxu0 0.0
      %538 = vmatpush1.msra.mxu0 0.0
      %539 = vmatprep.subr.mxu0 0.0
      %540 = vmatpush1.msra.mxu0 0.0
      %541 = vmatprep.subr.mxu0 0.0
      %542 = vmatpush1.msra.mxu0 0.0
      %543 = vmatprep.subr.mxu0 0.0
      %544 = vmatpush1.msra.mxu0 0.0
      %545 = vmatprep.subr.mxu0 0.0
      %546 = vmatpush1.msra.mxu0 0.0
      %547 = vmatprep.subr.mxu0 0.0
      %548 = vmatpush1.msra.mxu0 %v517
      %549 = vmatprep.subr.mxu0 0.0
      %550 = vmatpush1.msra.mxu0 %v516
      %551 = vmatprep.subr.mxu0 0.0
      %552 = vmatpush1.msra.mxu0 %v515
      %553 = vmatprep.subr.mxu0 0.0
      %554 = vmatpush1.msra.mxu0 %v514
      %555 = vmatprep.subr.mxu0 0.0
      %556 = vmatpush2.msra.mxu0 0.0
      %557 = vmatprep.subr.mxu0 0.0
      %558 = vmatpush2.msra.mxu0 0.0
      %559 = vmatprep.subr.mxu0 0.0
      %560 = vmatpush2.msra.mxu0 0.0
      %561 = vmatprep.subr.mxu0 0.0
      %562 = vmatpush2.msra.mxu0 0.0
      %563 = vmatprep.subr.mxu0 0.0
      %564 = vmatpush2.msra.mxu0 0.0
      %565 = vmatprep.subr.mxu0 0.0
      %566 = vmatpush2.msra.mxu0 0.0
      %567 = vmatprep.subr.mxu0 0.0
      %568 = vmatpush2.msra.mxu0 0.0
      %569 = vmatprep.subr.mxu0 0.0
      %570 = vmatpush2.msra.mxu0 0.0
      %571 = vmatprep.subr.mxu0 0.0
      %572 = vmatpush2.msra.mxu0 0.0
      %573 = vmatprep.subr.mxu0 0.0
      %574 = vmatpush2.msra.mxu0 0.0
      %575 = vmatprep.subr.mxu0 0.0
      %576 = vmatpush2.msra.mxu0 0.0
      %577 = vmatprep.subr.mxu0 0.0
      %578 = vmatpush2.msra.mxu0 0.0
      %579 = vmatprep.subr.mxu0 0.0
      %580 = vmatpush2.msra.mxu0 0.0
      %581 = vmatprep.subr.mxu0 0.0
      %582 = vmatpush2.msra.mxu0 0.0
      %583 = vmatprep.subr.mxu0 0.0
      %584 = vmatpush2.msra.mxu0 0.0
      %585 = vmatprep.subr.mxu0 0.0
      %586 = vmatpush2.msra.mxu0 0.0
      %587 = vmatprep.mubr.f32.mxu0 0.0
      %588 = vmatmul.mubr.f32.gmra.mxu0 %v521
      %v589 = vpop.f32.mrf.mxu0
      %v590 = vadd.f32 0.0, %v589
      %v591 = vpop.f32.mrf.mxu0
      %592 = vdwg.mxu0
      %v593 = vadd.f32 %v499, %v590
      %v594 = vxor.u32 %v593, 2147483648
      %v595 = vmul.f32 %v594, 1.442695
      %v596 = vpow.pop %v595
      %v597 = vadd.f32 %v596, 1.0
      %v598 = vrcp.pop %v597
      %v599 = vmul.f32 1.0, %v598
      %v601 = vlaneseq
      %v602 = vshrl.u32 %v601, 7
      %v603 = vsub.s32 0, %v602
      %v604 = vrot.slane %v518, %v603
      %605 = vrot.lane.b32.xlu0 %v604, 64
      %v606 = vpop.permute.xlu0 %605
      %v608 = vadd.f32 %v590, %v606
      %610 = vrot.lane.b32.xlu0 %v608, 64
      %v611 = vpop.permute.xlu0 %610
      %v613 = vmul.f32 %v599, %v611
      %615 = vrot.lane.b32.xlu0 %v613, 64
      %v616 = vpop.permute.xlu0 %615
      %v618 = vadd.f32 %v511, %v616
      %v619 = vtanh.pop %v618
      %v620 = vsub.f32 1.0, %v599
      %622 = vrot.lane.b32.xlu0 %v619, 96
      %v623 = vpop.permute.xlu0 %622
      %v625 = vmul.f32 %v620, %v623
      %626 = vrot.lane.b32.xlu0 %v519, 32
      %v627 = vpop.permute.xlu0 %626
      %v629 = vmul.f32 %v599, %v627
      %v630 = vadd.f32 %v625, %v629
      %632 = vrot.lane.b32.xlu0 %v630, 96
      %v633 = vpop.permute.xlu0 %632
      %635 = vst.msk [vmem:[#allocation3] sm:$0xff] %vm402, %v633
      %v636 = vsel %vm402, %v633, 0
      %638 = vmatprep.subr.mxu0 0.0
      %639 = vmatpush1.msra.mxu0 0.0
      %640 = vmatprep.subr.mxu0 0.0
      %641 = vmatpush1.msra.mxu0 0.0
      %642 = vmatprep.subr.mxu0 0.0
      %643 = vmatpush1.msra.mxu0 0.0
      %644 = vmatprep.subr.mxu0 0.0
      %645 = vmatpush1.msra.mxu0 0.0
      %646 = vmatprep.subr.mxu0 0.0
      %647 = vmatpush1.msra.mxu0 0.0
      %648 = vmatprep.subr.mxu0 0.0
      %649 = vmatpush1.msra.mxu0 0.0
      %650 = vmatprep.subr.mxu0 0.0
      %651 = vmatpush1.msra.mxu0 0.0
      %652 = vmatprep.subr.mxu0 0.0
      %653 = vmatpush1.msra.mxu0 0.0
      %654 = vmatprep.subr.mxu0 0.0
      %655 = vmatpush1.msra.mxu0 0.0
      %656 = vmatprep.subr.mxu0 0.0
      %657 = vmatpush1.msra.mxu0 0.0
      %658 = vmatprep.subr.mxu0 0.0
      %659 = vmatpush1.msra.mxu0 0.0
      %660 = vmatprep.subr.mxu0 0.0
      %661 = vmatpush1.msra.mxu0 0.0
      %662 = vmatprep.subr.mxu0 0.0
      %663 = vmatpush1.msra.mxu0 %v517
      %664 = vmatprep.subr.mxu0 0.0
      %665 = vmatpush1.msra.mxu0 %v516
      %666 = vmatprep.subr.mxu0 0.0
      %667 = vmatpush1.msra.mxu0 %v515
      %668 = vmatprep.subr.mxu0 0.0
      %669 = vmatpush1.msra.mxu0 %v514
      %670 = vmatprep.subr.mxu0 0.0
      %671 = vmatpush2.msra.mxu0 0.0
      %672 = vmatprep.subr.mxu0 0.0
      %673 = vmatpush2.msra.mxu0 0.0
      %674 = vmatprep.subr.mxu0 0.0
      %675 = vmatpush2.msra.mxu0 0.0
      %676 = vmatprep.subr.mxu0 0.0
      %677 = vmatpush2.msra.mxu0 0.0
      %678 = vmatprep.subr.mxu0 0.0
      %679 = vmatpush2.msra.mxu0 0.0
      %680 = vmatprep.subr.mxu0 0.0
      %681 = vmatpush2.msra.mxu0 0.0
      %682 = vmatprep.subr.mxu0 0.0
      %683 = vmatpush2.msra.mxu0 0.0
      %684 = vmatprep.subr.mxu0 0.0
      %685 = vmatpush2.msra.mxu0 0.0
      %686 = vmatprep.subr.mxu0 0.0
      %687 = vmatpush2.msra.mxu0 0.0
      %688 = vmatprep.subr.mxu0 0.0
      %689 = vmatpush2.msra.mxu0 0.0
      %690 = vmatprep.subr.mxu0 0.0
      %691 = vmatpush2.msra.mxu0 0.0
      %692 = vmatprep.subr.mxu0 0.0
      %693 = vmatpush2.msra.mxu0 0.0
      %694 = vmatprep.subr.mxu0 0.0
      %695 = vmatpush2.msra.mxu0 0.0
      %696 = vmatprep.subr.mxu0 0.0
      %697 = vmatpush2.msra.mxu0 0.0
      %698 = vmatprep.subr.mxu0 0.0
      %699 = vmatpush2.msra.mxu0 0.0
      %700 = vmatprep.subr.mxu0 0.0
      %701 = vmatpush2.msra.mxu0 0.0
      %702 = vmatprep.mubr.f32.mxu0 0.0
      %703 = vmatmul.mubr.f32.gmra.mxu0 %v636
      %v704 = vpop.f32.mrf.mxu0
      %v705 = vadd.f32 0.0, %v704
      %v706 = vpop.f32.mrf.mxu0
      %707 = vdwg.mxu0
      %v708 = vadd.f32 %v500, %v705
      %v709 = vxor.u32 %v708, 2147483648
      %v710 = vmul.f32 %v709, 1.442695
      %v711 = vpow.pop %v710
      %v712 = vadd.f32 %v711, 1.0
      %v713 = vrcp.pop %v712
      %v714 = vmul.f32 1.0, %v713
      %v715 = vadd.f32 %v705, %v606
      %717 = vrot.lane.b32.xlu0 %v715, 64
      %v718 = vpop.permute.xlu0 %717
      %v720 = vmul.f32 %v714, %v718
      %722 = vrot.lane.b32.xlu0 %v720, 64
      %v723 = vpop.permute.xlu0 %722
      %v725 = vadd.f32 %v512, %v723
      %v726 = vtanh.pop %v725
      %v727 = vsub.f32 1.0, %v714
      %729 = vrot.lane.b32.xlu0 %v726, 96
      %v730 = vpop.permute.xlu0 %729
      %v732 = vmul.f32 %v727, %v730
      %v733 = vmul.f32 %v714, %v630
      %v734 = vadd.f32 %v732, %v733
      %736 = vrot.lane.b32.xlu0 %v734, 96
      %v737 = vpop.permute.xlu0 %736
      %739 = vst.msk [vmem:[#allocation3 + $0x8] sm:$0xff] %vm402, %v737
      %v740 = vsel %vm402, %v737, 0
      %742 = vmatprep.subr.mxu0 0.0
      %743 = vmatpush1.msra.mxu0 0.0
      %744 = vmatprep.subr.mxu0 0.0
      %745 = vmatpush1.msra.mxu0 0.0
      %746 = vmatprep.subr.mxu0 0.0
      %747 = vmatpush1.msra.mxu0 0.0
      %748 = vmatprep.subr.mxu0 0.0
      %749 = vmatpush1.msra.mxu0 0.0
      %750 = vmatprep.subr.mxu0 0.0
      %751 = vmatpush1.msra.mxu0 0.0
      %752 = vmatprep.subr.mxu0 0.0
      %753 = vmatpush1.msra.mxu0 0.0
      %754 = vmatprep.subr.mxu0 0.0
      %755 = vmatpush1.msra.mxu0 0.0
      %756 = vmatprep.subr.mxu0 0.0
      %757 = vmatpush1.msra.mxu0 0.0
      %758 = vmatprep.subr.mxu0 0.0
      %759 = vmatpush1.msra.mxu0 0.0
      %760 = vmatprep.subr.mxu0 0.0
      %761 = vmatpush1.msra.mxu0 0.0
      %762 = vmatprep.subr.mxu0 0.0
      %763 = vmatpush1.msra.mxu0 0.0
      %764 = vmatprep.subr.mxu0 0.0
      %765 = vmatpush1.msra.mxu0 0.0
      %766 = vmatprep.subr.mxu0 0.0
      %767 = vmatpush1.msra.mxu0 %v517
      %768 = vmatprep.subr.mxu0 0.0
      %769 = vmatpush1.msra.mxu0 %v516
      %770 = vmatprep.subr.mxu0 0.0
      %771 = vmatpush1.msra.mxu0 %v515
      %772 = vmatprep.subr.mxu0 0.0
      %773 = vmatpush1.msra.mxu0 %v514
      %774 = vmatprep.subr.mxu0 0.0
      %775 = vmatpush2.msra.mxu0 0.0
      %776 = vmatprep.subr.mxu0 0.0
      %777 = vmatpush2.msra.mxu0 0.0
      %778 = vmatprep.subr.mxu0 0.0
      %779 = vmatpush2.msra.mxu0 0.0
      %780 = vmatprep.subr.mxu0 0.0
      %781 = vmatpush2.msra.mxu0 0.0
      %782 = vmatprep.subr.mxu0 0.0
      %783 = vmatpush2.msra.mxu0 0.0
      %784 = vmatprep.subr.mxu0 0.0
      %785 = vmatpush2.msra.mxu0 0.0
      %786 = vmatprep.subr.mxu0 0.0
      %787 = vmatpush2.msra.mxu0 0.0
      %788 = vmatprep.subr.mxu0 0.0
      %789 = vmatpush2.msra.mxu0 0.0
      %790 = vmatprep.subr.mxu0 0.0
      %791 = vmatpush2.msra.mxu0 0.0
      %792 = vmatprep.subr.mxu0 0.0
      %793 = vmatpush2.msra.mxu0 0.0
      %794 = vmatprep.subr.mxu0 0.0
      %795 = vmatpush2.msra.mxu0 0.0
      %796 = vmatprep.subr.mxu0 0.0
      %797 = vmatpush2.msra.mxu0 0.0
      %798 = vmatprep.subr.mxu0 0.0
      %799 = vmatpush2.msra.mxu0 0.0
      %800 = vmatprep.subr.mxu0 0.0
      %801 = vmatpush2.msra.mxu0 0.0
      %802 = vmatprep.subr.mxu0 0.0
      %803 = vmatpush2.msra.mxu0 0.0
      %804 = vmatprep.subr.mxu0 0.0
      %805 = vmatpush2.msra.mxu0 0.0
      %806 = vmatprep.mubr.f32.mxu0 0.0
      %807 = vmatmul.mubr.f32.gmra.mxu0 %v740
      %v808 = vpop.f32.mrf.mxu0
      %v809 = vadd.f32 0.0, %v808
      %v810 = vpop.f32.mrf.mxu0
      %811 = vdwg.mxu0
      %v812 = vadd.f32 %v501, %v809
      %v813 = vxor.u32 %v812, 2147483648
      %v814 = vmul.f32 %v813, 1.442695
      %v815 = vpow.pop %v814
      %v816 = vadd.f32 %v815, 1.0
      %v817 = vrcp.pop %v816
      %v818 = vmul.f32 1.0, %v817
      %v819 = vadd.f32 %v809, %v606
      %821 = vrot.lane.b32.xlu0 %v819, 64
      %v822 = vpop.permute.xlu0 %821
      %v824 = vmul.f32 %v818, %v822
      %826 = vrot.lane.b32.xlu0 %v824, 64
      %v827 = vpop.permute.xlu0 %826
      %v829 = vadd.f32 %v513, %v827
      %v830 = vtanh.pop %v829
      %v831 = vsub.f32 1.0, %v818
      %833 = vrot.lane.b32.xlu0 %v830, 96
      %v834 = vpop.permute.xlu0 %833
      %v836 = vmul.f32 %v831, %v834
      %v837 = vmul.f32 %v818, %v734
      %v838 = vadd.f32 %v836, %v837
      %840 = vrot.lane.b32.xlu0 %v838, 96
      %v841 = vpop.permute.xlu0 %840
      %843 = vst.msk [vmem:[#allocation3 + $0x10] sm:$0xff] %vm402, %v841
      %844 = vst.msk [vmem:[#allocation2] sm:$0xff] %vm402, %v841
      %v845 = vld [vmem:[#allocation3] sm:$0xff]
      %v846 = vld [vmem:[#allocation3 + $0x8] sm:$0xff]
      %v847 = vld [vmem:[#allocation3 + $0x10] sm:$0xff]
      %s848 = scalar_lea.vmem %s2, 32
      %v849 = vld [vmem:[%s848] sm:$0xff]
      %v850 = vld [vmem:[%s848 + $0x8] sm:$0xff]
      %v851 = vld [vmem:[%s848 + $0x10] sm:$0xff]
      %v852 = vld [vmem:[%s848 + $0x18] sm:$0xff]
      %v854 = vsel %vm402, %v845, 0
      %v857 = vsel %vm402, %v846, 0
      %v860 = vsel %vm402, %v847, 0
      %862 = vmatprep.subr.mxu0 0.0
      %863 = vmatpush1.msra.mxu0 0.0
      %864 = vmatprep.subr.mxu0 0.0
      %865 = vmatpush1.msra.mxu0 0.0
      %866 = vmatprep.subr.mxu0 0.0
      %867 = vmatpush1.msra.mxu0 0.0
      %868 = vmatprep.subr.mxu0 0.0
      %869 = vmatpush1.msra.mxu0 0.0
      %870 = vmatprep.subr.mxu0 0.0
      %871 = vmatpush1.msra.mxu0 0.0
      %872 = vmatprep.subr.mxu0 0.0
      %873 = vmatpush1.msra.mxu0 0.0
      %874 = vmatprep.subr.mxu0 0.0
      %875 = vmatpush1.msra.mxu0 0.0
      %876 = vmatprep.subr.mxu0 0.0
      %877 = vmatpush1.msra.mxu0 0.0
      %878 = vmatprep.subr.mxu0 0.0
      %879 = vmatpush1.msra.mxu0 0.0
      %880 = vmatprep.subr.mxu0 0.0
      %881 = vmatpush1.msra.mxu0 0.0
      %882 = vmatprep.subr.mxu0 0.0
      %883 = vmatpush1.msra.mxu0 0.0
      %884 = vmatprep.subr.mxu0 0.0
      %885 = vmatpush1.msra.mxu0 0.0
      %886 = vmatprep.subr.mxu0 0.0
      %887 = vmatpush1.msra.mxu0 %v852
      %888 = vmatprep.subr.mxu0 0.0
      %889 = vmatpush1.msra.mxu0 %v851
      %890 = vmatprep.subr.mxu0 0.0
      %891 = vmatpush1.msra.mxu0 %v850
      %892 = vmatprep.subr.mxu0 0.0
      %893 = vmatpush1.msra.mxu0 %v849
      %894 = vmatprep.subr.mxu0 0.0
      %895 = vmatpush2.msra.mxu0 0.0
      %896 = vmatprep.subr.mxu0 0.0
      %897 = vmatpush2.msra.mxu0 0.0
      %898 = vmatprep.subr.mxu0 0.0
      %899 = vmatpush2.msra.mxu0 0.0
      %900 = vmatprep.subr.mxu0 0.0
      %901 = vmatpush2.msra.mxu0 0.0
      %902 = vmatprep.subr.mxu0 0.0
      %903 = vmatpush2.msra.mxu0 0.0
      %904 = vmatprep.subr.mxu0 0.0
      %905 = vmatpush2.msra.mxu0 0.0
      %906 = vmatprep.subr.mxu0 0.0
      %907 = vmatpush2.msra.mxu0 0.0
      %908 = vmatprep.subr.mxu0 0.0
      %909 = vmatpush2.msra.mxu0 0.0
      %910 = vmatprep.subr.mxu0 0.0
      %911 = vmatpush2.msra.mxu0 0.0
      %912 = vmatprep.subr.mxu0 0.0
      %913 = vmatpush2.msra.mxu0 0.0
      %914 = vmatprep.subr.mxu0 0.0
      %915 = vmatpush2.msra.mxu0 0.0
      %916 = vmatprep.subr.mxu0 0.0
      %917 = vmatpush2.msra.mxu0 0.0
      %918 = vmatprep.subr.mxu0 0.0
      %919 = vmatpush2.msra.mxu0 0.0
      %920 = vmatprep.subr.mxu0 0.0
      %921 = vmatpush2.msra.mxu0 0.0
      %922 = vmatprep.subr.mxu0 0.0
      %923 = vmatpush2.msra.mxu0 0.0
      %924 = vmatprep.subr.mxu0 0.0
      %925 = vmatpush2.msra.mxu0 0.0
      %926 = vmatprep.mubr.f32.mxu0 0.0
      %927 = vmatmul.mubr.f32.gmra.mxu0 %v854
      %v928 = vpop.f32.mrf.mxu0
      %v929 = vadd.f32 0.0, %v928
      %v930 = vpop.f32.mrf.mxu0
      %931 = vmatprep.mubr.f32.mxu0 0.0
      %932 = vmatmul.mubr.f32.gmra.mxu0 %v857
      %v933 = vpop.f32.mrf.mxu0
      %v934 = vadd.f32 0.0, %v933
      %v935 = vpop.f32.mrf.mxu0
      %936 = vmatprep.mubr.f32.mxu0 0.0
      %937 = vmatmul.mubr.f32.gmra.mxu0 %v860
      %v938 = vpop.f32.mrf.mxu0
      %v939 = vadd.f32 0.0, %v938
      %v940 = vpop.f32.mrf.mxu0
      %941 = vdwg.mxu0
      %s942 = scalar_lea.vmem %s4, 1
      %v943 = vld [vmem:[%s942] sm:$0x1]
      %v945 = vlaneseq
      %v946 = vshrl.u32 %v945, 7
      %v947 = vsub.s32 0, %v946
      %v948 = vrot.slane %v943, %v947
      %v950 = vadd.f32 %v929, %v948
      %v951 = vadd.f32 %v934, %v948
      %v952 = vadd.f32 %v939, %v948
      %s953 = scalar_lea.vmem %s5, 1
      %v954 = vld [vmem:[%s953] sm:$0x1]
      %v956 = vlaneseq
      %v957 = vshrl.u32 %v956, 7
      %v958 = vsub.s32 0, %v957
      %v959 = vrot.slane %v954, %v958
      %960 = vrot.lane.b32.xlu0 %v959, 64
      %v961 = vpop.permute.xlu0 %960
      %v963 = vadd.f32 %v929, %v961
      %v964 = vadd.f32 %v934, %v961
      %v965 = vadd.f32 %v939, %v961
      %s966 = scalar_lea.vmem %s3, 32
      %v967 = vld [vmem:[%s966] sm:$0xff]
      %v968 = vld [vmem:[%s966 + $0x8] sm:$0xff]
      %v969 = vld [vmem:[%s966 + $0x10] sm:$0xff]
      %v970 = vld [vmem:[%s966 + $0x18] sm:$0xff]
      %s971 = scalar_lea.vmem %s6, 1
      %v972 = vld [vmem:[%s971] sm:$0x1]
      %s973 = scalar_lea.vmem [#allocation2], 8
      %v974 = vld [vmem:[%s973] sm:$0xff]
      %v976 = vsel %vm402, %v974, 0
      %978 = vmatprep.subr.mxu0 0.0
      %979 = vmatpush1.msra.mxu0 0.0
      %980 = vmatprep.subr.mxu0 0.0
      %981 = vmatpush1.msra.mxu0 0.0
      %982 = vmatprep.subr.mxu0 0.0
      %983 = vmatpush1.msra.mxu0 0.0
      %984 = vmatprep.subr.mxu0 0.0
      %985 = vmatpush1.msra.mxu0 0.0
      %986 = vmatprep.subr.mxu0 0.0
      %987 = vmatpush1.msra.mxu0 0.0
      %988 = vmatprep.subr.mxu0 0.0
      %989 = vmatpush1.msra.mxu0 0.0
      %990 = vmatprep.subr.mxu0 0.0
      %991 = vmatpush1.msra.mxu0 0.0
      %992 = vmatprep.subr.mxu0 0.0
      %993 = vmatpush1.msra.mxu0 0.0
      %994 = vmatprep.subr.mxu0 0.0
      %995 = vmatpush1.msra.mxu0 0.0
      %996 = vmatprep.subr.mxu0 0.0
      %997 = vmatpush1.msra.mxu0 0.0
      %998 = vmatprep.subr.mxu0 0.0
      %999 = vmatpush1.msra.mxu0 0.0
      %1000 = vmatprep.subr.mxu0 0.0
      %1001 = vmatpush1.msra.mxu0 0.0
      %1002 = vmatprep.subr.mxu0 0.0
      %1003 = vmatpush1.msra.mxu0 %v970
      %1004 = vmatprep.subr.mxu0 0.0
      %1005 = vmatpush1.msra.mxu0 %v969
      %1006 = vmatprep.subr.mxu0 0.0
      %1007 = vmatpush1.msra.mxu0 %v968
      %1008 = vmatprep.subr.mxu0 0.0
      %1009 = vmatpush1.msra.mxu0 %v967
      %1010 = vmatprep.subr.mxu0 0.0
      %1011 = vmatpush2.msra.mxu0 0.0
      %1012 = vmatprep.subr.mxu0 0.0
      %1013 = vmatpush2.msra.mxu0 0.0
      %1014 = vmatprep.subr.mxu0 0.0
      %1015 = vmatpush2.msra.mxu0 0.0
      %1016 = vmatprep.subr.mxu0 0.0
      %1017 = vmatpush2.msra.mxu0 0.0
      %1018 = vmatprep.subr.mxu0 0.0
      %1019 = vmatpush2.msra.mxu0 0.0
      %1020 = vmatprep.subr.mxu0 0.0
      %1021 = vmatpush2.msra.mxu0 0.0
      %1022 = vmatprep.subr.mxu0 0.0
      %1023 = vmatpush2.msra.mxu0 0.0
      %1024 = vmatprep.subr.mxu0 0.0
      %1025 = vmatpush2.msra.mxu0 0.0
      %1026 = vmatprep.subr.mxu0 0.0
      %1027 = vmatpush2.msra.mxu0 0.0
      %1028 = vmatprep.subr.mxu0 0.0
      %1029 = vmatpush2.msra.mxu0 0.0
      %1030 = vmatprep.subr.mxu0 0.0
      %1031 = vmatpush2.msra.mxu0 0.0
      %1032 = vmatprep.subr.mxu0 0.0
      %1033 = vmatpush2.msra.mxu0 0.0
      %1034 = vmatprep.subr.mxu0 0.0
      %1035 = vmatpush2.msra.mxu0 0.0
      %1036 = vmatprep.subr.mxu0 0.0
      %1037 = vmatpush2.msra.mxu0 0.0
      %1038 = vmatprep.subr.mxu0 0.0
      %1039 = vmatpush2.msra.mxu0 0.0
      %1040 = vmatprep.subr.mxu0 0.0
      %1041 = vmatpush2.msra.mxu0 0.0
      %1042 = vmatprep.mubr.f32.mxu0 0.0
      %1043 = vmatmul.mubr.f32.gmra.mxu0 %v976
      %v1044 = vpop.f32.mrf.mxu0
      %v1045 = vadd.f32 0.0, %v1044
      %v1046 = vpop.f32.mrf.mxu0
      %1047 = vdwg.mxu0
      %v1048 = vadd.f32 %v950, %v1045
      %v1049 = vxor.u32 %v1048, 2147483648
      %v1050 = vmul.f32 %v1049, 1.442695
      %v1051 = vpow.pop %v1050
      %v1052 = vadd.f32 %v1051, 1.0
      %v1053 = vrcp.pop %v1052
      %v1054 = vmul.f32 1.0, %v1053
      %v1056 = vlaneseq
      %v1057 = vshrl.u32 %v1056, 7
      %v1058 = vsub.s32 0, %v1057
      %v1059 = vrot.slane %v972, %v1058
      %1060 = vrot.lane.b32.xlu0 %v1059, 64
      %v1061 = vpop.permute.xlu0 %1060
      %v1063 = vadd.f32 %v1045, %v1061
      %1065 = vrot.lane.b32.xlu0 %v1063, 64
      %v1066 = vpop.permute.xlu0 %1065
      %v1068 = vmul.f32 %v1054, %v1066
      %1070 = vrot.lane.b32.xlu0 %v1068, 64
      %v1071 = vpop.permute.xlu0 %1070
      %v1073 = vadd.f32 %v963, %v1071
      %v1074 = vtanh.pop %v1073
      %v1075 = vsub.f32 1.0, %v1054
      %1077 = vrot.lane.b32.xlu0 %v1074, 96
      %v1078 = vpop.permute.xlu0 %1077
      %v1080 = vmul.f32 %v1075, %v1078
      %1081 = vrot.lane.b32.xlu0 %v974, 32
      %v1082 = vpop.permute.xlu0 %1081
      %v1084 = vmul.f32 %v1054, %v1082
      %v1085 = vadd.f32 %v1080, %v1084
      %1087 = vrot.lane.b32.xlu0 %v1085, 96
      %v1088 = vpop.permute.xlu0 %1087
      %1090 = vst.msk [vmem:[#allocation4] sm:$0xff] %vm402, %v1088
      %v1091 = vsel %vm402, %v1088, 0
      %1093 = vmatprep.subr.mxu0 0.0
      %1094 = vmatpush1.msra.mxu0 0.0
      %1095 = vmatprep.subr.mxu0 0.0
      %1096 = vmatpush1.msra.mxu0 0.0
      %1097 = vmatprep.subr.mxu0 0.0
      %1098 = vmatpush1.msra.mxu0 0.0
      %1099 = vmatprep.subr.mxu0 0.0
      %1100 = vmatpush1.msra.mxu0 0.0
      %1101 = vmatprep.subr.mxu0 0.0
      %1102 = vmatpush1.msra.mxu0 0.0
      %1103 = vmatprep.subr.mxu0 0.0
      %1104 = vmatpush1.msra.mxu0 0.0
      %1105 = vmatprep.subr.mxu0 0.0
      %1106 = vmatpush1.msra.mxu0 0.0
      %1107 = vmatprep.subr.mxu0 0.0
      %1108 = vmatpush1.msra.mxu0 0.0
      %1109 = vmatprep.subr.mxu0 0.0
      %1110 = vmatpush1.msra.mxu0 0.0
      %1111 = vmatprep.subr.mxu0 0.0
      %1112 = vmatpush1.msra.mxu0 0.0
      %1113 = vmatprep.subr.mxu0 0.0
      %1114 = vmatpush1.msra.mxu0 0.0
      %1115 = vmatprep.subr.mxu0 0.0
      %1116 = vmatpush1.msra.mxu0 0.0
      %1117 = vmatprep.subr.mxu0 0.0
      %1118 = vmatpush1.msra.mxu0 %v970
      %1119 = vmatprep.subr.mxu0 0.0
      %1120 = vmatpush1.msra.mxu0 %v969
      %1121 = vmatprep.subr.mxu0 0.0
      %1122 = vmatpush1.msra.mxu0 %v968
      %1123 = vmatprep.subr.mxu0 0.0
      %1124 = vmatpush1.msra.mxu0 %v967
      %1125 = vmatprep.subr.mxu0 0.0
      %1126 = vmatpush2.msra.mxu0 0.0
      %1127 = vmatprep.subr.mxu0 0.0
      %1128 = vmatpush2.msra.mxu0 0.0
      %1129 = vmatprep.subr.mxu0 0.0
      %1130 = vmatpush2.msra.mxu0 0.0
      %1131 = vmatprep.subr.mxu0 0.0
      %1132 = vmatpush2.msra.mxu0 0.0
      %1133 = vmatprep.subr.mxu0 0.0
      %1134 = vmatpush2.msra.mxu0 0.0
      %1135 = vmatprep.subr.mxu0 0.0
      %1136 = vmatpush2.msra.mxu0 0.0
      %1137 = vmatprep.subr.mxu0 0.0
      %1138 = vmatpush2.msra.mxu0 0.0
      %1139 = vmatprep.subr.mxu0 0.0
      %1140 = vmatpush2.msra.mxu0 0.0
      %1141 = vmatprep.subr.mxu0 0.0
      %1142 = vmatpush2.msra.mxu0 0.0
      %1143 = vmatprep.subr.mxu0 0.0
      %1144 = vmatpush2.msra.mxu0 0.0
      %1145 = vmatprep.subr.mxu0 0.0
      %1146 = vmatpush2.msra.mxu0 0.0
      %1147 = vmatprep.subr.mxu0 0.0
      %1148 = vmatpush2.msra.mxu0 0.0
      %1149 = vmatprep.subr.mxu0 0.0
      %1150 = vmatpush2.msra.mxu0 0.0
      %1151 = vmatprep.subr.mxu0 0.0
      %1152 = vmatpush2.msra.mxu0 0.0
      %1153 = vmatprep.subr.mxu0 0.0
      %1154 = vmatpush2.msra.mxu0 0.0
      %1155 = vmatprep.subr.mxu0 0.0
      %1156 = vmatpush2.msra.mxu0 0.0
      %1157 = vmatprep.mubr.f32.mxu0 0.0
      %1158 = vmatmul.mubr.f32.gmra.mxu0 %v1091
      %v1159 = vpop.f32.mrf.mxu0
      %v1160 = vadd.f32 0.0, %v1159
      %v1161 = vpop.f32.mrf.mxu0
      %1162 = vdwg.mxu0
      %v1163 = vadd.f32 %v951, %v1160
      %v1164 = vxor.u32 %v1163, 2147483648
      %v1165 = vmul.f32 %v1164, 1.442695
      %v1166 = vpow.pop %v1165
      %v1167 = vadd.f32 %v1166, 1.0
      %v1168 = vrcp.pop %v1167
      %v1169 = vmul.f32 1.0, %v1168
      %v1170 = vadd.f32 %v1160, %v1061
      %1172 = vrot.lane.b32.xlu0 %v1170, 64
      %v1173 = vpop.permute.xlu0 %1172
      %v1175 = vmul.f32 %v1169, %v1173
      %1177 = vrot.lane.b32.xlu0 %v1175, 64
      %v1178 = vpop.permute.xlu0 %1177
      %v1180 = vadd.f32 %v964, %v1178
      %v1181 = vtanh.pop %v1180
      %v1182 = vsub.f32 1.0, %v1169
      %1184 = vrot.lane.b32.xlu0 %v1181, 96
      %v1185 = vpop.permute.xlu0 %1184
      %v1187 = vmul.f32 %v1182, %v1185
      %v1188 = vmul.f32 %v1169, %v1085
      %v1189 = vadd.f32 %v1187, %v1188
      %1191 = vrot.lane.b32.xlu0 %v1189, 96
      %v1192 = vpop.permute.xlu0 %1191
      %1194 = vst.msk [vmem:[#allocation4 + $0x8] sm:$0xff] %vm402, %v1192
      %v1195 = vsel %vm402, %v1192, 0
      %1197 = vmatprep.subr.mxu0 0.0
      %1198 = vmatpush1.msra.mxu0 0.0
      %1199 = vmatprep.subr.mxu0 0.0
      %1200 = vmatpush1.msra.mxu0 0.0
      %1201 = vmatprep.subr.mxu0 0.0
      %1202 = vmatpush1.msra.mxu0 0.0
      %1203 = vmatprep.subr.mxu0 0.0
      %1204 = vmatpush1.msra.mxu0 0.0
      %1205 = vmatprep.subr.mxu0 0.0
      %1206 = vmatpush1.msra.mxu0 0.0
      %1207 = vmatprep.subr.mxu0 0.0
      %1208 = vmatpush1.msra.mxu0 0.0
      %1209 = vmatprep.subr.mxu0 0.0
      %1210 = vmatpush1.msra.mxu0 0.0
      %1211 = vmatprep.subr.mxu0 0.0
      %1212 = vmatpush1.msra.mxu0 0.0
      %1213 = vmatprep.subr.mxu0 0.0
      %1214 = vmatpush1.msra.mxu0 0.0
      %1215 = vmatprep.subr.mxu0 0.0
      %1216 = vmatpush1.msra.mxu0 0.0
      %1217 = vmatprep.subr.mxu0 0.0
      %1218 = vmatpush1.msra.mxu0 0.0
      %1219 = vmatprep.subr.mxu0 0.0
      %1220 = vmatpush1.msra.mxu0 0.0
      %1221 = vmatprep.subr.mxu0 0.0
      %1222 = vmatpush1.msra.mxu0 %v970
      %1223 = vmatprep.subr.mxu0 0.0
      %1224 = vmatpush1.msra.mxu0 %v969
      %1225 = vmatprep.subr.mxu0 0.0
      %1226 = vmatpush1.msra.mxu0 %v968
      %1227 = vmatprep.subr.mxu0 0.0
      %1228 = vmatpush1.msra.mxu0 %v967
      %1229 = vmatprep.subr.mxu0 0.0
      %1230 = vmatpush2.msra.mxu0 0.0
      %1231 = vmatprep.subr.mxu0 0.0
      %1232 = vmatpush2.msra.mxu0 0.0
      %1233 = vmatprep.subr.mxu0 0.0
      %1234 = vmatpush2.msra.mxu0 0.0
      %1235 = vmatprep.subr.mxu0 0.0
      %1236 = vmatpush2.msra.mxu0 0.0
      %1237 = vmatprep.subr.mxu0 0.0
      %1238 = vmatpush2.msra.mxu0 0.0
      %1239 = vmatprep.subr.mxu0 0.0
      %1240 = vmatpush2.msra.mxu0 0.0
      %1241 = vmatprep.subr.mxu0 0.0
      %1242 = vmatpush2.msra.mxu0 0.0
      %1243 = vmatprep.subr.mxu0 0.0
      %1244 = vmatpush2.msra.mxu0 0.0
      %1245 = vmatprep.subr.mxu0 0.0
      %1246 = vmatpush2.msra.mxu0 0.0
      %1247 = vmatprep.subr.mxu0 0.0
      %1248 = vmatpush2.msra.mxu0 0.0
      %1249 = vmatprep.subr.mxu0 0.0
      %1250 = vmatpush2.msra.mxu0 0.0
      %1251 = vmatprep.subr.mxu0 0.0
      %1252 = vmatpush2.msra.mxu0 0.0
      %1253 = vmatprep.subr.mxu0 0.0
      %1254 = vmatpush2.msra.mxu0 0.0
      %1255 = vmatprep.subr.mxu0 0.0
      %1256 = vmatpush2.msra.mxu0 0.0
      %1257 = vmatprep.subr.mxu0 0.0
      %1258 = vmatpush2.msra.mxu0 0.0
      %1259 = vmatprep.subr.mxu0 0.0
      %1260 = vmatpush2.msra.mxu0 0.0
      %1261 = vmatprep.mubr.f32.mxu0 0.0
      %1262 = vmatmul.mubr.f32.gmra.mxu0 %v1195
      %v1263 = vpop.f32.mrf.mxu0
      %v1264 = vadd.f32 0.0, %v1263
      %v1265 = vpop.f32.mrf.mxu0
      %1266 = vdwg.mxu0
      %v1267 = vadd.f32 %v952, %v1264
      %v1268 = vxor.u32 %v1267, 2147483648
      %v1269 = vmul.f32 %v1268, 1.442695
      %v1270 = vpow.pop %v1269
      %v1271 = vadd.f32 %v1270, 1.0
      %v1272 = vrcp.pop %v1271
      %v1273 = vmul.f32 1.0, %v1272
      %v1274 = vadd.f32 %v1264, %v1061
      %1276 = vrot.lane.b32.xlu0 %v1274, 64
      %v1277 = vpop.permute.xlu0 %1276
      %v1279 = vmul.f32 %v1273, %v1277
      %1281 = vrot.lane.b32.xlu0 %v1279, 64
      %v1282 = vpop.permute.xlu0 %1281
      %v1284 = vadd.f32 %v965, %v1282
      %v1285 = vtanh.pop %v1284
      %v1286 = vsub.f32 1.0, %v1273
      %1288 = vrot.lane.b32.xlu0 %v1285, 96
      %v1289 = vpop.permute.xlu0 %1288
      %v1291 = vmul.f32 %v1286, %v1289
      %v1292 = vmul.f32 %v1273, %v1189
      %v1293 = vadd.f32 %v1291, %v1292
      %1295 = vrot.lane.b32.xlu0 %v1293, 96
      %v1296 = vpop.permute.xlu0 %1295
      %1298 = vst.msk [vmem:[#allocation4 + $0x10] sm:$0xff] %vm402, %v1296
      %1299 = vst.msk [vmem:[%s973] sm:$0xff] %vm402, %v1296
      %v1300 = vld [vmem:[#allocation4] sm:$0xff]
      %v1301 = vld [vmem:[#allocation4 + $0x8] sm:$0xff]
      %v1302 = vld [vmem:[#allocation4 + $0x10] sm:$0xff]
      %v1303 = vld [vmem:[%s7] sm:$0xff]
      %v1304 = vld [vmem:[%s7 + $0x8] sm:$0xff]
      %v1305 = vld [vmem:[%s7 + $0x10] sm:$0xff]
      %v1306 = vld [vmem:[%s7 + $0x18] sm:$0xff]
      %v1307 = vld [vmem:[%s8] sm:$0x1]
      %v1309 = vlaneseq
      %v1310 = vshrl.u32 %v1309, 7
      %v1311 = vsub.s32 0, %v1310
      %v1312 = vrot.slane %v1307, %v1311
      %v1315 = vsel %vm402, %v1300, 0
      %v1318 = vsel %vm402, %v1301, 0
      %v1321 = vsel %vm402, %v1302, 0
      %1323 = vmatprep.subr.mxu0 0.0
      %1324 = vmatpush1.msra.mxu0 0.0
      %1325 = vmatprep.subr.mxu0 0.0
      %1326 = vmatpush1.msra.mxu0 0.0
      %1327 = vmatprep.subr.mxu0 0.0
      %1328 = vmatpush1.msra.mxu0 0.0
      %1329 = vmatprep.subr.mxu0 0.0
      %1330 = vmatpush1.msra.mxu0 0.0
      %1331 = vmatprep.subr.mxu0 0.0
      %1332 = vmatpush1.msra.mxu0 0.0
      %1333 = vmatprep.subr.mxu0 0.0
      %1334 = vmatpush1.msra.mxu0 0.0
      %1335 = vmatprep.subr.mxu0 0.0
      %1336 = vmatpush1.msra.mxu0 0.0
      %1337 = vmatprep.subr.mxu0 0.0
      %1338 = vmatpush1.msra.mxu0 0.0
      %1339 = vmatprep.subr.mxu0 0.0
      %1340 = vmatpush1.msra.mxu0 0.0
      %1341 = vmatprep.subr.mxu0 0.0
      %1342 = vmatpush1.msra.mxu0 0.0
      %1343 = vmatprep.subr.mxu0 0.0
      %1344 = vmatpush1.msra.mxu0 0.0
      %1345 = vmatprep.subr.mxu0 0.0
      %1346 = vmatpush1.msra.mxu0 0.0
      %1347 = vmatprep.subr.mxu0 0.0
      %1348 = vmatpush1.msra.mxu0 %v1306
      %1349 = vmatprep.subr.mxu0 0.0
      %1350 = vmatpush1.msra.mxu0 %v1305
      %1351 = vmatprep.subr.mxu0 0.0
      %1352 = vmatpush1.msra.mxu0 %v1304
      %1353 = vmatprep.subr.mxu0 0.0
      %1354 = vmatpush1.msra.mxu0 %v1303
      %1355 = vmatprep.subr.mxu0 0.0
      %1356 = vmatpush2.msra.mxu0 0.0
      %1357 = vmatprep.subr.mxu0 0.0
      %1358 = vmatpush2.msra.mxu0 0.0
      %1359 = vmatprep.subr.mxu0 0.0
      %1360 = vmatpush2.msra.mxu0 0.0
      %1361 = vmatprep.subr.mxu0 0.0
      %1362 = vmatpush2.msra.mxu0 0.0
      %1363 = vmatprep.subr.mxu0 0.0
      %1364 = vmatpush2.msra.mxu0 0.0
      %1365 = vmatprep.subr.mxu0 0.0
      %1366 = vmatpush2.msra.mxu0 0.0
      %1367 = vmatprep.subr.mxu0 0.0
      %1368 = vmatpush2.msra.mxu0 0.0
      %1369 = vmatprep.subr.mxu0 0.0
      %1370 = vmatpush2.msra.mxu0 0.0
      %1371 = vmatprep.subr.mxu0 0.0
      %1372 = vmatpush2.msra.mxu0 0.0
      %1373 = vmatprep.subr.mxu0 0.0
      %1374 = vmatpush2.msra.mxu0 0.0
      %1375 = vmatprep.subr.mxu0 0.0
      %1376 = vmatpush2.msra.mxu0 0.0
      %1377 = vmatprep.subr.mxu0 0.0
      %1378 = vmatpush2.msra.mxu0 0.0
      %1379 = vmatprep.subr.mxu0 0.0
      %1380 = vmatpush2.msra.mxu0 0.0
      %1381 = vmatprep.subr.mxu0 0.0
      %1382 = vmatpush2.msra.mxu0 0.0
      %1383 = vmatprep.subr.mxu0 0.0
      %1384 = vmatpush2.msra.mxu0 0.0
      %1385 = vmatprep.subr.mxu0 0.0
      %1386 = vmatpush2.msra.mxu0 0.0
      %1387 = vmatprep.mubr.f32.mxu0 0.0
      %1388 = vmatmul.mubr.f32.gmra.mxu0 %v1315
      %v1389 = vpop.f32.mrf.mxu0
      %v1390 = vadd.f32 %v1312, %v1389
      %v1391 = vpop.f32.mrf.mxu0
      %1392 = vmatprep.mubr.f32.mxu0 0.0
      %1393 = vmatmul.mubr.f32.gmra.mxu0 %v1318
      %v1394 = vpop.f32.mrf.mxu0
      %v1395 = vadd.f32 %v1312, %v1394
      %v1396 = vpop.f32.mrf.mxu0
      %1397 = vmatprep.mubr.f32.mxu0 0.0
      %1398 = vmatmul.mubr.f32.gmra.mxu0 %v1321
      %v1399 = vpop.f32.mrf.mxu0
      %v1400 = vadd.f32 %v1312, %v1399
      %v1401 = vpop.f32.mrf.mxu0
      %1402 = vdwg.mxu0
      %vm1403 = vcmask 130048
      %1404 = vst.msk [vmem:[%s368] sm:$0xff] %vm1403, %v1390
      %1405 = vst.msk [vmem:[%s368 + $0x8] sm:$0xff] %vm1403, %v1395
      %1406 = vst.msk [vmem:[%s368 + $0x10] sm:$0xff] %vm1403, %v1400
      %s1407 = smul.u32 %s24, 3
      %s1408 = sadd.s32 %s1407, %s25
      %s1409 = smul.u32 3, %s1408
      %p1410 = scmp.lt.s32.totalorder %s1409, 8
      %s1411 = scalar_select %p1410, %s1409, 8
      %s1412 = smul.addr %s1411, 8
      %s1413 = scalar_lea.vmem %s9, %s1412
      // Predicated region
      $region61: #{tpu_custom_call.1} parent=55 // pred_check
        %p1414 = pneg %p252
      $region62: #{tpu_custom_call.1} parent=55 // pred_check_branch
        %1416 = sbr.rel (%p1414) target = $region64
      $region63: #{tpu_custom_call.1} parent=55 // pred_region
        %s1417 = smul.u32 %s24, 3
        %s1418 = sadd.s32 %s1417, %s25
        %s1419 = smul.u32 3, %s1418
      $region64: #{tpu_custom_call.1} parent=55 // pred_fallthru
        _
    $region56: #{tpu_custom_call.1} parent=5 // pred_fallthru
      _
    %p1420 = scmp.le.s32.totalorder 2, %s15
    // Predicated region
    $region65: #{tpu_custom_call.1} parent=5 // pred_check
      %p1421 = pneg %p1420
    $region66: #{tpu_custom_call.1} parent=5 // pred_check_branch
      %1423 = sbr.rel (%p1421) target = $region68
    $region67: #{tpu_custom_call.1} parent=5 // pred_region
      %s1424 = ssub.s32 %s15, 2
      // Predicated region
      $region69: #{tpu_custom_call.1} parent=67 // pred_check
        %p1425 = pneg %p258
      $region70: #{tpu_custom_call.1} parent=67 // pred_check_branch
        %1427 = sbr.rel (%p1425) target = $region72
      $region71: #{tpu_custom_call.1} parent=67 // pred_region
        %s1428 = smul.u32 %s26, 3
        %s1429 = sadd.s32 %s1428, %s27
        %s1430 = smul.u32 3, %s1429
        %p1431 = scmp.lt.s32.totalorder %s1430, 8
        %s1432 = scalar_select %p1431, %s1430, 8
        %s1433 = smul.addr %s1432, 8
        %s1434 = scalar_lea.vmem %s9, %s1433
      $region72: #{tpu_custom_call.1} parent=67 // pred_fallthru
        _
    $region68: #{tpu_custom_call.1} parent=5 // pred_fallthru
      _
  $region6: #{tpu_custom_call.1} parent=0 // loop_footer
    %s19 = sadd.s32 1, %s15
  $region7: #{tpu_custom_call.1} parent=0 // loop_footer_branch
    %14 = sbr.rel target = $region3
  $region8: #{tpu_custom_call.1} parent=0 // loop_exit
    _

</llo_original>
